<compile_context>
chip_gen: v7x
topology: tpu7x:2x2x1
jax: 0.10.0
libtpu: 0.0.40
codegen_flags: <defaults>
</compile_context>

<pallas_src>
import functools

import jax
import jax.numpy as jnp
from jax import lax
from jax.experimental import pallas as pl
from jax.experimental.pallas import tpu as pltpu


def _sdpa_kernel(inv_scale_ref, seed_ref, q_ref, k_ref, v_ref, o_ref,
                 m_sc, l_sc, acc_sc, *, p, seq_q, seq_k):
    ki = pl.program_id(2)
    nk = pl.num_programs(2)

    @pl.when(ki == 0)
    def _():
        m_sc[...] = jnp.full_like(m_sc, -jnp.inf)
        l_sc[...] = jnp.zeros_like(l_sc)
        acc_sc[...] = jnp.zeros_like(acc_sc)

    # Pre-scale q by 1/scale (exact: dot is linear) -> (tq, D) multiply instead
    # of a (tq, tk) multiply on the score tile.  MXU inputs in bf16, f32 acc.
    inv_scale = inv_scale_ref[0]
    q = (q_ref[...].astype(jnp.float32) * inv_scale).astype(jnp.bfloat16)
    k = k_ref[...].astype(jnp.bfloat16)
    v = v_ref[...].astype(jnp.bfloat16)

    # x6 / x7: (q / scale) @ k^T   -> (tq, tk) f32
    s = lax.dot_general(q, k, (((1,), (1,)), ((), ())),
                        preferred_element_type=jnp.float32)

    # x8: online softmax (running max / running sum, both f32).
    m_prev = m_sc[...]
    m_new = jnp.maximum(m_prev, jnp.max(s, axis=-1, keepdims=True))
    alpha = jnp.exp(m_prev - m_new)
    e = jnp.exp(s - m_new)                                   # unnormalized probs, f32
    m_sc[...] = m_new
    l_sc[...] = alpha * l_sc[...] + jnp.sum(e, axis=-1, keepdims=True)

    # x9: dropout on the softmax numerator (statically specialized).
    # Masking the unnormalized numerator while keeping the full-sum denominator
    # is exactly dropout applied *after* softmax; the 1/(1-p) rescale is folded
    # into the epilogue.
    if p > 0.0:
        tq, tk = s.shape
        b = pl.program_id(0)
        qi = pl.program_id(1)
        base = (b * seq_q + qi * tq) * seq_k + ki * tk
        row = lax.broadcasted_iota(jnp.int32, (tq, 1), 0) * seq_k   # (tq, 1)
        col = lax.broadcasted_iota(jnp.int32, (1, tk), 1)           # (1, tk)
        x = (base + row + col).astype(jnp.uint32)                   # global elem id
        x = x ^ (seed_ref[0].astype(jnp.uint32) * jnp.uint32(0x9E3779B9))
        # lowbias32 mixer (integer VPU ops only; works in interpret mode too).
        x = x ^ (x >> 16)
        x = x * jnp.uint32(0x7FEB352D)
        x = x ^ (x >> 15)
        x = x * jnp.uint32(0x846CA68B)
        x = x ^ (x >> 16)
        thresh = jnp.uint32(min(int(p * (2 ** 32)), 2 ** 32 - 1))
        e = jnp.where(x >= thresh, e, 0.0)        # keep iff U[0,1) >= p

    # x10 numerator: PV matmul in bf16 with f32 accumulation.
    acc_sc[...] = alpha * acc_sc[...] + lax.dot_general(
        e.astype(jnp.bfloat16), v, (((1,), (0,)), ((), ())),
        preferred_element_type=jnp.float32)

    @pl.when(ki == nk - 1)
    def _():
        inv_keep = 1.0 / (1.0 - p) if p > 0.0 else 1.0      # static python float
        # Exact normalization: one (tq, 1) divide per output block.
        o_ref[...] = (acc_sc[...] *
                      (jnp.float32(inv_keep) / l_sc[...])).astype(o_ref.dtype)


def sdpa(q, k, v, scale, p=0.0, seed=0, *, tq=256, tk=256):
    """softmax((q @ k^T) / scale) -> dropout(p) -> @ v.

    q: (B, Sq, D), k: (B, Sk, D), v: (B, Sk, Dv), scale: (1,) runtime scalar,
    p: static Python float in [0, 1), seed: int (used only when p > 0).
    """
    B, Sq, D = q.shape
    _, Sk, _ = k.shape
    Dv = v.shape[-1]
    tq = min(tq, Sq)
    tk = min(tk, Sk)
    assert Sq % tq == 0 and Sk % tk == 0
    p = float(p)
    assert 0.0 <= p < 1.0

    scale = jnp.asarray(scale, jnp.float32).reshape((1,))
    inv_scale = 1.0 / scale
    seed = jnp.asarray(seed, jnp.int32).reshape((1,))

    kernel = functools.partial(_sdpa_kernel, p=p, seq_q=Sq, seq_k=Sk)
    grid = (B, Sq // tq, Sk // tk)
    return pl.pallas_call(
        kernel,
        out_shape=jax.ShapeDtypeStruct((B, Sq, Dv), q.dtype),
        grid=grid,
        in_specs=[
            pl.BlockSpec(memory_space=pltpu.SMEM),                   # inv_scale (1,) f32
            pl.BlockSpec(memory_space=pltpu.SMEM),                   # seed      (1,) i32
            pl.BlockSpec((None, tq, D), lambda b, qi, ki: (b, qi, 0)),
            pl.BlockSpec((None, tk, D), lambda b, qi, ki: (b, ki, 0)),
            pl.BlockSpec((None, tk, Dv), lambda b, qi, ki: (b, ki, 0)),
        ],
        out_specs=pl.BlockSpec((None, tq, Dv), lambda b, qi, ki: (b, qi, 0)),
        scratch_shapes=[
            pltpu.VMEM((tq, 1), jnp.float32),    # running max
            pltpu.VMEM((tq, 1), jnp.float32),    # running sum
            pltpu.VMEM((tq, Dv), jnp.float32),   # output accumulator
        ],
        compiler_params=pltpu.CompilerParams(
            dimension_semantics=("parallel", "parallel", "arbitrary")),
    )(inv_scale, seed, q, k, v)


if __name__ == "__main__":
    key = jax.random.PRNGKey(0)
    kq, kk, kv, ks = jax.random.split(key, 4)

    # Small, mutually consistent, lane-dense attention shapes.
    B, Sq, Sk, D, Dv = 2, 256, 512, 128, 128
    q = jax.random.normal(kq, (B, Sq, D), jnp.float32).astype(jnp.bfloat16)   # x1
    k = jax.random.normal(kk, (B, Sk, D), jnp.float32).astype(jnp.bfloat16)   # x2
    v = jax.random.normal(kv, (B, Sk, Dv), jnp.float32).astype(jnp.bfloat16)  # x3
    # x5: positive, well-conditioned scale (~sqrt(D) like standard attention).
    scale = jnp.sqrt(jnp.float32(D)) * (
        jnp.abs(jax.random.normal(ks, (1,), jnp.float32)) + 0.5)

    # p == 0 path (deterministic): compare against an f32 reference on the same
    # bf16 inputs.
    out = jax.block_until_ready(sdpa(q, k, v, scale, p=0.0))
    qf, kf, vf = (q.astype(jnp.float32), k.astype(jnp.float32),
                  v.astype(jnp.float32))
    s_ref = jnp.einsum('bqd,bkd->bqk', qf, kf) / scale[0]
    ref = jnp.einsum('bqk,bkd->bqd', jax.nn.softmax(s_ref, axis=-1), vf)
    out_f = out.astype(jnp.float32)
    assert jnp.allclose(out_f, ref, atol=2e-2, rtol=2e-2), \
        float(jnp.max(jnp.abs(out_f - ref)))

    # Exercise the p > 0 (dropout) path: must run, be finite, and differ from
    # the deterministic output.
    out_p = jax.block_until_ready(sdpa(q, k, v, scale, p=0.2, seed=123))
    out_pf = out_p.astype(jnp.float32)
    assert bool(jnp.all(jnp.isfinite(out_pf)))
    assert bool(jnp.any(jnp.abs(out_pf - out_f) > 1e-3))

    print("KERNEL_OK")
</pallas_src>

<mosaic_0001>
module attributes {stable_mosaic.version = 11 : i64} {
  func.func @_sdpa_kernel(%arg0: i32, %arg1: i32, %arg2: i32, %arg3: memref<1xf32, #tpu.memory_space<smem>>, %arg4: memref<1xi32, #tpu.memory_space<smem>>, %arg5: memref<1x256x128xbf16, #tpu.memory_space<vmem>>, %arg6: memref<1x256x128xbf16, #tpu.memory_space<vmem>>, %arg7: memref<1x256x128xbf16, #tpu.memory_space<vmem>>, %arg8: memref<1x256x128xbf16, #tpu.memory_space<vmem>>, %arg9: memref<256x1xf32, #tpu.memory_space<vmem>>, %arg10: memref<256x1xf32, #tpu.memory_space<vmem>>, %arg11: memref<256x128xf32, #tpu.memory_space<vmem>>) attributes {dimension_semantics = [#tpu.dimension_semantics<parallel>, #tpu.dimension_semantics<parallel>, #tpu.dimension_semantics<arbitrary>], iteration_bounds = array<i64: 2, 1, 2>, scalar_prefetch = 0 : i64, scratch_operands = 3 : i64, tpu.core_type = #tpu.core_type<tc>, window_params = [{transform_indices = @transform_0, window_bounds = array<i64: 1>}, {transform_indices = @transform_1, window_bounds = array<i64: 1>}, {transform_indices = @transform_2, window_bounds = array<i64: 1, 256, 128>}, {transform_indices = @transform_3, window_bounds = array<i64: 1, 256, 128>}, {transform_indices = @transform_4, window_bounds = array<i64: 1, 256, 128>}, {transform_indices = @transform_5, window_bounds = array<i64: 1, 256, 128>}]} {
    %c0_i32 = arith.constant 0 : i32
    %0 = arith.cmpi eq, %arg2, %c0_i32 : i32
    %1 = arith.extui %0 : i1 to i32
    %c0_i32_0 = arith.constant 0 : i32
    %2 = arith.cmpi ne, %1, %c0_i32_0 : i32
    scf.if %2 {
      %cst_26 = arith.constant 0xFF800000 : f32
      %41 = vector.broadcast %cst_26 : f32 to vector<256x1xf32>
      %c0_27 = arith.constant 0 : index
      %c0_28 = arith.constant 0 : index
      %42 = vector.load %arg9[%c0_27, %c0_28] : memref<256x1xf32, #tpu.memory_space<vmem>>, vector<256x1xf32>
      tpu.vector_store %arg9[%c0_27, %c0_28], %41 {strides = array<i32>} : memref<256x1xf32, #tpu.memory_space<vmem>>, vector<256x1xf32>,
      %cst_29 = arith.constant 0.000000e+00 : f32
      %43 = vector.broadcast %cst_29 : f32 to vector<256x1xf32>
      %c0_30 = arith.constant 0 : index
      %c0_31 = arith.constant 0 : index
      %44 = vector.load %arg10[%c0_30, %c0_31] : memref<256x1xf32, #tpu.memory_space<vmem>>, vector<256x1xf32>
      tpu.vector_store %arg10[%c0_30, %c0_31], %43 {strides = array<i32>} : memref<256x1xf32, #tpu.memory_space<vmem>>, vector<256x1xf32>,
      %cst_32 = arith.constant 0.000000e+00 : f32
      %45 = vector.broadcast %cst_32 : f32 to vector<256x128xf32>
      %c0_33 = arith.constant 0 : index
      %c0_34 = arith.constant 0 : index
      %46 = vector.load %arg11[%c0_33, %c0_34] : memref<256x128xf32, #tpu.memory_space<vmem>>, vector<256x128xf32>
      tpu.vector_store %arg11[%c0_33, %c0_34], %45 {strides = array<i32>} : memref<256x128xf32, #tpu.memory_space<vmem>>, vector<256x128xf32>,
    } else {
    }
    %c0 = arith.constant 0 : index
    %3 = memref.load %arg3[%c0] : memref<1xf32, #tpu.memory_space<smem>>
    %c0_1 = arith.constant 0 : index
    %c0_2 = arith.constant 0 : index
    %c0_3 = arith.constant 0 : index
    %4 = vector.load %arg5[%c0_1, %c0_2, %c0_3] : memref<1x256x128xbf16, #tpu.memory_space<vmem>>, vector<1x256x128xbf16>
    %5 = vector.shape_cast %4 : vector<1x256x128xbf16> to vector<256x128xbf16>
    %6 = arith.extf %5 : vector<256x128xbf16> to vector<256x128xf32>
    %7 = vector.broadcast %3 : f32 to vector<256x128xf32>
    %8 = arith.mulf %6, %7 : vector<256x128xf32>
    %9 = arith.truncf %8 : vector<256x128xf32> to vector<256x128xbf16>
    %c0_4 = arith.constant 0 : index
    %c0_5 = arith.constant 0 : index
    %c0_6 = arith.constant 0 : index
    %10 = vector.load %arg6[%c0_4, %c0_5, %c0_6] : memref<1x256x128xbf16, #tpu.memory_space<vmem>>, vector<1x256x128xbf16>
    %11 = vector.shape_cast %10 : vector<1x256x128xbf16> to vector<256x128xbf16>
    %c0_7 = arith.constant 0 : index
    %c0_8 = arith.constant 0 : index
    %c0_9 = arith.constant 0 : index
    %12 = vector.load %arg7[%c0_7, %c0_8, %c0_9] : memref<1x256x128xbf16, #tpu.memory_space<vmem>>, vector<1x256x128xbf16>
    %13 = vector.shape_cast %12 : vector<1x256x128xbf16> to vector<256x128xbf16>
    %cst = arith.constant dense<0.000000e+00> : vector<256x256xf32>
    %14 = tpu.matmul %9, %11, %cst {dimension_numbers = #tpu.dot_dimension_numbers<[1], [1], [0], [0], [0, 0, 1, 0], [], []>} : vector<256x128xbf16>, vector<256x128xbf16>, vector<256x256xf32> -> vector<256x256xf32>
    %c0_10 = arith.constant 0 : index
    %c0_11 = arith.constant 0 : index
    %15 = vector.load %arg9[%c0_10, %c0_11] : memref<256x1xf32, #tpu.memory_space<vmem>>, vector<256x1xf32>
    %cst_12 = arith.constant dense<0xFF800000> : vector<256xf32>
    %16 = vector.multi_reduction <maximumf>, %14, %cst_12 [1] : vector<256x256xf32> to vector<256xf32>
    %17 = vector.shape_cast %16 : vector<256xf32> to vector<256x1xf32>
    %18 = arith.maximumf %15, %17 : vector<256x1xf32>
    %19 = arith.subf %15, %18 : vector<256x1xf32>
    %20 = math.exp %19 : vector<256x1xf32>
    %21 = vector.broadcast %18 : vector<256x1xf32> to vector<256x256xf32>
    %22 = arith.subf %14, %21 : vector<256x256xf32>
    %23 = math.exp %22 : vector<256x256xf32>
    %c0_13 = arith.constant 0 : index
    %c0_14 = arith.constant 0 : index
    %24 = vector.load %arg9[%c0_13, %c0_14] : memref<256x1xf32, #tpu.memory_space<vmem>>, vector<256x1xf32>
    tpu.vector_store %arg9[%c0_13, %c0_14], %18 {strides = array<i32>} : memref<256x1xf32, #tpu.memory_space<vmem>>, vector<256x1xf32>,
    %c0_15 = arith.constant 0 : index
    %c0_16 = arith.constant 0 : index
    %25 = vector.load %arg10[%c0_15, %c0_16] : memref<256x1xf32, #tpu.memory_space<vmem>>, vector<256x1xf32>
    %26 = arith.mulf %20, %25 : vector<256x1xf32>
    %cst_17 = arith.constant dense<0.000000e+00> : vector<256xf32>
    %27 = vector.multi_reduction <add>, %23, %cst_17 [1] : vector<256x256xf32> to vector<256xf32>
    %28 = vector.shape_cast %27 : vector<256xf32> to vector<256x1xf32>
    %29 = arith.addf %26, %28 : vector<256x1xf32>
    %c0_18 = arith.constant 0 : index
    %c0_19 = arith.constant 0 : index
    %30 = vector.load %arg10[%c0_18, %c0_19] : memref<256x1xf32, #tpu.memory_space<vmem>>, vector<256x1xf32>
    tpu.vector_store %arg10[%c0_18, %c0_19], %29 {strides = array<i32>} : memref<256x1xf32, #tpu.memory_space<vmem>>, vector<256x1xf32>,
    %c0_20 = arith.constant 0 : index
    %c0_21 = arith.constant 0 : index
    %31 = vector.load %arg11[%c0_20, %c0_21] : memref<256x128xf32, #tpu.memory_space<vmem>>, vector<256x128xf32>
    %32 = vector.broadcast %20 : vector<256x1xf32> to vector<256x128xf32>
    %33 = arith.mulf %32, %31 : vector<256x128xf32>
    %34 = arith.truncf %23 : vector<256x256xf32> to vector<256x256xbf16>
    %cst_22 = arith.constant dense<0.000000e+00> : vector<256x128xf32>
    %35 = tpu.matmul %34, %13, %cst_22 {dimension_numbers = #tpu.dot_dimension_numbers<[1], [0], [0], [1], [0, 0, 1, 1], [], []>} : vector<256x256xbf16>, vector<256x128xbf16>, vector<256x128xf32> -> vector<256x128xf32>
    %36 = arith.addf %33, %35 : vector<256x128xf32>
    %c0_23 = arith.constant 0 : index
    %c0_24 = arith.constant 0 : index
    %37 = vector.load %arg11[%c0_23, %c0_24] : memref<256x128xf32, #tpu.memory_space<vmem>>, vector<256x128xf32>
    tpu.vector_store %arg11[%c0_23, %c0_24], %36 {strides = array<i32>} : memref<256x128xf32, #tpu.memory_space<vmem>>, vector<256x128xf32>,
    %c1_i32 = arith.constant 1 : i32
    %38 = arith.cmpi eq, %arg2, %c1_i32 : i32
    %39 = arith.extui %38 : i1 to i32
    %c0_i32_25 = arith.constant 0 : i32
    %40 = arith.cmpi ne, %39, %c0_i32_25 : i32
    scf.if %40 {
      %c0_26 = arith.constant 0 : index
      %c0_27 = arith.constant 0 : index
      %41 = vector.load %arg11[%c0_26, %c0_27] : memref<256x128xf32, #tpu.memory_space<vmem>>, vector<256x128xf32>
      %c0_28 = arith.constant 0 : index
      %c0_29 = arith.constant 0 : index
      %42 = vector.load %arg10[%c0_28, %c0_29] : memref<256x1xf32, #tpu.memory_space<vmem>>, vector<256x1xf32>
      %cst_30 = arith.constant 1.000000e+00 : f32
      %43 = vector.broadcast %cst_30 : f32 to vector<256x1xf32>
      %44 = arith.divf %43, %42 : vector<256x1xf32>
      %45 = vector.broadcast %44 : vector<256x1xf32> to vector<256x128xf32>
      %46 = arith.mulf %41, %45 : vector<256x128xf32>
      %47 = arith.truncf %46 : vector<256x128xf32> to vector<256x128xbf16>
      %c0_31 = arith.constant 0 : index
      %c0_32 = arith.constant 0 : index
      %c0_33 = arith.constant 0 : index
      %48 = vector.load %arg8[%c0_31, %c0_32, %c0_33] : memref<1x256x128xbf16, #tpu.memory_space<vmem>>, vector<1x256x128xbf16>
      %49 = vector.shape_cast %48 : vector<1x256x128xbf16> to vector<256x128xbf16>
      %50 = vector.shape_cast %47 : vector<256x128xbf16> to vector<1x256x128xbf16>
      tpu.vector_store %arg8[%c0_31, %c0_32, %c0_33], %50 {strides = array<i32>} : memref<1x256x128xbf16, #tpu.memory_space<vmem>>, vector<1x256x128xbf16>,
    } else {
    }
    return
  }
  func.func @transform_0(%arg0: i32, %arg1: i32, %arg2: i32) -> i32 {
    %c0_i32 = arith.constant 0 : i32
    %c0_i32_0 = arith.constant 0 : i32
    return %c0_i32 : i32
  }
  func.func @transform_1(%arg0: i32, %arg1: i32, %arg2: i32) -> i32 {
    %c0_i32 = arith.constant 0 : i32
    %c0_i32_0 = arith.constant 0 : i32
    return %c0_i32 : i32
  }
  func.func @transform_2(%arg0: i32, %arg1: i32, %arg2: i32) -> (i32, i32, i32) {
    %c0_i32 = arith.constant 0 : i32
    %c0_i32_0 = arith.constant 0 : i32
    return %arg0, %arg1, %c0_i32 : i32, i32, i32
  }
  func.func @transform_3(%arg0: i32, %arg1: i32, %arg2: i32) -> (i32, i32, i32) {
    %c0_i32 = arith.constant 0 : i32
    %c0_i32_0 = arith.constant 0 : i32
    return %arg0, %arg2, %c0_i32 : i32, i32, i32
  }
  func.func @transform_4(%arg0: i32, %arg1: i32, %arg2: i32) -> (i32, i32, i32) {
    %c0_i32 = arith.constant 0 : i32
    %c0_i32_0 = arith.constant 0 : i32
    return %arg0, %arg2, %c0_i32 : i32, i32, i32
  }
  func.func @transform_5(%arg0: i32, %arg1: i32, %arg2: i32) -> (i32, i32, i32) {
    %c0_i32 = arith.constant 0 : i32
    %c0_i32_0 = arith.constant 0 : i32
    return %arg0, %arg1, %c0_i32 : i32, i32, i32
  }
}

</mosaic_0001>

<llo_original>
// kernel: tpu_custom_call.1
$region0: #{tpu_custom_call.1}
  #allocation0 [shape = 'u32[]', space=smem, size = 0x4, offset = 0x4, fixed_abs, tag = 'smem constant byte address 0x4 - core index']
  #allocation1 [shape = 'u32[144,128]{1,0:T(1,128)}', space=vmem, size = 0x12000, scoped, tag = 'internal scratch']
  #allocation2 [shape = 'f32[256,1]{1,0:T(8,128)}', space=vmem, size = 0x20000, scoped, tag = 'scratch operand']
  #allocation3 [shape = 'f32[256,1]{1,0:T(8,128)}', space=vmem, size = 0x20000, scoped, tag = 'scratch operand']
  #allocation4 [shape = 'f32[256,128]{1,0:T(8,128)}', space=vmem, size = 0x20000, scoped, tag = 'scratch operand']
  #allocation5 [shape = 'f32[1]{0:T(128)S(6)}', space=smem, size = 0x200, scoped, tag = 'scoped memory for tpu_custom_call.1']
  #allocation6 [shape = 's32[1]{0:T(128)S(6)}', space=smem, size = 0x200, scoped, tag = 'scoped memory for tpu_custom_call.1']
  %s0 = inlined_call_operand.<no memory space> [shape: f32[1], index: 0, kind: input, shape index: {}]
  %s1 = inlined_call_operand.<no memory space> [shape: s32[1], index: 1, kind: input, shape index: {}]
  %s2 = inlined_call_operand.hbm [shape: bf16[2,256,128], index: 2, kind: input, shape index: {}]
  %s3 = inlined_call_operand.hbm [shape: bf16[2,512,128], index: 3, kind: input, shape index: {}]
  %s4 = inlined_call_operand.hbm [shape: bf16[2,512,128], index: 4, kind: input, shape index: {}]
  %s5 = inlined_call_operand.hbm [shape: bf16[2,256,128], index: 5, kind: output, shape index: {}]
  %s6 = sld [smem:[#allocation0]]
  $region73: #{tpu_custom_call.1} parent=0
    _
  %s8 = ssub.s32 1, %s6
  %s9 = scalar_select 0, %s8, %s6
  %10 = sst [smem:[#allocation5]] %s0
  %11 = sst [smem:[#allocation6]] %s1
  $region1: #{tpu_custom_call.1} parent=0
    #allocation7 [shape = 'u8[131072]{0}', space=vmem, size = 0x20000, scoped, tag = 'input window, operand 2']
    #allocation8 [shape = 's32[2]{0}', space=sflag, size = 0x8, scoped, tag = 'scoped memory for tpu_custom_call.1']
    #allocation9 [shape = 's32[2]{0}', space=sflag, size = 0x8, scoped, tag = 'scoped memory for tpu_custom_call.1']
    #allocation10 [shape = 'u8[131072]{0}', space=vmem, size = 0x20000, scoped, tag = 'input window, operand 3']
    #allocation11 [shape = 's32[2]{0}', space=sflag, size = 0x8, scoped, tag = 'scoped memory for tpu_custom_call.1']
    #allocation12 [shape = 'u8[131072]{0}', space=vmem, size = 0x20000, scoped, tag = 'input window, operand 4']
    #allocation13 [shape = 'u8[131072]{0}', space=vmem, size = 0x20000, scoped, tag = 'output window, operand 0']
    %12 = vsyncpa [#allocation8], 0
    %s13 = scalar_lea.sflag [#allocation8], 1
    %14 = vsyncpa %s13, 0
    %15 = vsyncpa [#allocation11], 0
    %s16 = scalar_lea.sflag [#allocation11], 1
    %17 = vsyncpa %s16, 0
    %18 = vsyncpa [#allocation9], 0
    %s19 = scalar_lea.sflag [#allocation9], 1
    %20 = vsyncpa %s19, 0
    loop: start=0, step=1, limit=6
    $region2: #{tpu_custom_call.1} parent=1 // loop_pre_header
      _
    $region3: #{tpu_custom_call.1} parent=1 // loop_header
      %s22 = sphi 0, %s26
      %p23 = scmp.ge.s32.totalorder %s22, 6
      %s29 = sphi 0, %s48
      %s30 = sphi 0, %s44
      %s31 = sphi 0, %s40
      %s32 = sphi 0, %s29
      %s33 = sphi 0, %s30
      %s34 = sphi 0, %s31
      %s35 = sphi 0, %s32
      %s36 = sphi 0, %s33
      %s37 = sphi 0, %s34
      %s49 = sphi 0, %s49
      %s51 = sphi 0, %s49
      %s52 = sphi 0, %s51
      %s66 = sphi 0, %s52
      %s70 = sphi 0, %s70
      %s72 = sphi 0, %s70
      %s73 = sphi 0, %s72
      %s87 = sphi 0, %s73
      %s95 = sphi 0, %s97
      %s98 = sphi 0, %s95
      %s99 = sphi 0, %s98
      %s115 = sphi 0, %s99
      %s123 = sphi 0, %s125
      %s126 = sphi 0, %s123
      %s127 = sphi 0, %s126
      %s143 = sphi 0, %s127
      %s151 = sphi 0, %s153
      %s154 = sphi 0, %s151
      %s155 = sphi 0, %s154
      %s171 = sphi 0, %s155
      %s179 = sphi 0, %s181
      %s182 = sphi 0, %s179
      %s183 = sphi 0, %s182
      %s199 = sphi 0, %s183
    $region4: #{tpu_custom_call.1} parent=1 // loop_header_branch
      %25 = sbr.rel (%p23) target = $region8
    $region5: #{tpu_custom_call.1} parent=1 // loop_body
      %s27 = ssub.s32 %s22, 1
      %s28 = ssub.s32 %s22, 2
      %s38 = sadd.s32 1, %s31
      %p39 = scmp.ge.s32.totalorder %s38, 2
      %s40 = scalar_select %p39, 0, %s38
      %s41 = sadd.s32 1, %s30
      %s42 = scalar_select %p39, %s41, %s30
      %p43 = scmp.ge.s32.totalorder %s42, 1
      %s44 = scalar_select %p43, 0, %s42
      %s45 = sadd.s32 1, %s29
      %s46 = scalar_select %p43, %s45, %s29
      %p47 = scmp.ge.s32.totalorder %s46, 2
      %s48 = scalar_select %p47, 0, %s46
      %s50 = sadd.s32 %s49, 1
      %p53 = scmp.eq.s32.totalorder %s22, 3
      %p54 = scmp.ne.s32.totalorder %s49, %s51
      %p55 = scmp.eq.s32.totalorder %s22, 0
      %p56 = por %p54, %p55
      %p57 = scmp.ne.s32.totalorder %s49, %s51
      %p58 = scmp.eq.s32.totalorder %s27, 3
      %p59 = por %p57, %p58
      %p60 = scmp.ne.s32.totalorder %s51, %s52
      %p61 = scmp.eq.s32.totalorder %s27, 0
      %p62 = por %p60, %p61
      %p63 = scmp.ne.s32.totalorder %s51, %s52
      %p64 = scmp.eq.s32.totalorder %s28, 3
      %p65 = por %p63, %p64
      %p67 = scmp.ne.s32.totalorder %s52, %s66
      %p68 = scmp.eq.s32.totalorder %s28, 0
      %p69 = por %p67, %p68
      %s71 = sadd.s32 %s70, 1
      %p74 = scmp.eq.s32.totalorder %s22, 3
      %p75 = scmp.ne.s32.totalorder %s70, %s72
      %p76 = scmp.eq.s32.totalorder %s22, 0
      %p77 = por %p75, %p76
      %p78 = scmp.ne.s32.totalorder %s70, %s72
      %p79 = scmp.eq.s32.totalorder %s27, 3
      %p80 = por %p78, %p79
      %p81 = scmp.ne.s32.totalorder %s72, %s73
      %p82 = scmp.eq.s32.totalorder %s27, 0
      %p83 = por %p81, %p82
      %p84 = scmp.ne.s32.totalorder %s72, %s73
      %p85 = scmp.eq.s32.totalorder %s28, 3
      %p86 = por %p84, %p85
      %p88 = scmp.ne.s32.totalorder %s73, %s87
      %p89 = scmp.eq.s32.totalorder %s28, 0
      %p90 = por %p88, %p89
      %s91 = ssub.s32 %s29, %s48
      %s92 = ssub.s32 %s30, %s44
      %s93 = sor.u32 %s91, %s92
      %p94 = scmp.eq.s32.totalorder %s93, 0
      %s96 = sadd.s32 %s95, 1
      %s97 = scalar_select %p94, %s95, %s96
      %p100 = pneg %p94
      %p101 = scmp.eq.s32.totalorder %s22, 3
      %p102 = por %p100, %p101
      %p103 = scmp.ne.s32.totalorder %s95, %s98
      %p104 = scmp.eq.s32.totalorder %s22, 0
      %p105 = por %p103, %p104
      %p106 = scmp.ne.s32.totalorder %s95, %s98
      %p107 = scmp.eq.s32.totalorder %s27, 3
      %p108 = por %p106, %p107
      %p109 = scmp.ne.s32.totalorder %s98, %s99
      %p110 = scmp.eq.s32.totalorder %s27, 0
      %p111 = por %p109, %p110
      %p112 = scmp.ne.s32.totalorder %s98, %s99
      %p113 = scmp.eq.s32.totalorder %s28, 3
      %p114 = por %p112, %p113
      %p116 = scmp.ne.s32.totalorder %s99, %s115
      %p117 = scmp.eq.s32.totalorder %s28, 0
      %p118 = por %p116, %p117
      %s119 = ssub.s32 %s29, %s48
      %s120 = ssub.s32 %s31, %s40
      %s121 = sor.u32 %s119, %s120
      %p122 = scmp.eq.s32.totalorder %s121, 0
      %s124 = sadd.s32 %s123, 1
      %s125 = scalar_select %p122, %s123, %s124
      %p128 = pneg %p122
      %p129 = scmp.eq.s32.totalorder %s22, 3
      %p130 = por %p128, %p129
      %p131 = scmp.ne.s32.totalorder %s123, %s126
      %p132 = scmp.eq.s32.totalorder %s22, 0
      %p133 = por %p131, %p132
      %p134 = scmp.ne.s32.totalorder %s123, %s126
      %p135 = scmp.eq.s32.totalorder %s27, 3
      %p136 = por %p134, %p135
      %p137 = scmp.ne.s32.totalorder %s126, %s127
      %p138 = scmp.eq.s32.totalorder %s27, 0
      %p139 = por %p137, %p138
      %p140 = scmp.ne.s32.totalorder %s126, %s127
      %p141 = scmp.eq.s32.totalorder %s28, 3
      %p142 = por %p140, %p141
      %p144 = scmp.ne.s32.totalorder %s127, %s143
      %p145 = scmp.eq.s32.totalorder %s28, 0
      %p146 = por %p144, %p145
      %s147 = ssub.s32 %s29, %s48
      %s148 = ssub.s32 %s31, %s40
      %s149 = sor.u32 %s147, %s148
      %p150 = scmp.eq.s32.totalorder %s149, 0
      %s152 = sadd.s32 %s151, 1
      %s153 = scalar_select %p150, %s151, %s152
      %p156 = pneg %p150
      %p157 = scmp.eq.s32.totalorder %s22, 3
      %p158 = por %p156, %p157
      %p159 = scmp.ne.s32.totalorder %s151, %s154
      %p160 = scmp.eq.s32.totalorder %s22, 0
      %p161 = por %p159, %p160
      %p162 = scmp.ne.s32.totalorder %s151, %s154
      %p163 = scmp.eq.s32.totalorder %s27, 3
      %p164 = por %p162, %p163
      %p165 = scmp.ne.s32.totalorder %s154, %s155
      %p166 = scmp.eq.s32.totalorder %s27, 0
      %p167 = por %p165, %p166
      %p168 = scmp.ne.s32.totalorder %s154, %s155
      %p169 = scmp.eq.s32.totalorder %s28, 3
      %p170 = por %p168, %p169
      %p172 = scmp.ne.s32.totalorder %s155, %s171
      %p173 = scmp.eq.s32.totalorder %s28, 0
      %p174 = por %p172, %p173
      %s175 = ssub.s32 %s29, %s48
      %s176 = ssub.s32 %s30, %s44
      %s177 = sor.u32 %s175, %s176
      %p178 = scmp.eq.s32.totalorder %s177, 0
      %s180 = sadd.s32 %s179, 1
      %s181 = scalar_select %p178, %s179, %s180
      %p184 = pneg %p178
      %p185 = scmp.eq.s32.totalorder %s22, 3
      %p186 = por %p184, %p185
      %p187 = scmp.ne.s32.totalorder %s179, %s182
      %p188 = scmp.eq.s32.totalorder %s22, 0
      %p189 = por %p187, %p188
      %p190 = scmp.ne.s32.totalorder %s179, %s182
      %p191 = scmp.eq.s32.totalorder %s27, 3
      %p192 = por %p190, %p191
      %p193 = scmp.ne.s32.totalorder %s182, %s183
      %p194 = scmp.eq.s32.totalorder %s27, 0
      %p195 = por %p193, %p194
      %p196 = scmp.ne.s32.totalorder %s182, %s183
      %p197 = scmp.eq.s32.totalorder %s28, 3
      %p198 = por %p196, %p197
      %p200 = scmp.ne.s32.totalorder %s183, %s199
      %p201 = scmp.eq.s32.totalorder %s28, 0
      %p202 = por %p200, %p201
      %p203 = scmp.le.s32.totalorder 1, %s22
      %p204 = scmp.lt.s32.totalorder %s22, 5
      %p205 = pnand %p203, %p204
      %p206 = pneg %p205
      // Predicated region
      $region9: #{tpu_custom_call.1} parent=5 // pred_check
        _
      $region10: #{tpu_custom_call.1} parent=5 // pred_check_branch
        %208 = sbr.rel (%p205) target = $region12
      $region11: #{tpu_custom_call.1} parent=5 // pred_region
        %s209 = ssub.s32 %s22, 1
        // Predicated region
        $region13: #{tpu_custom_call.1} parent=11 // pred_check
          %p210 = pneg %p62
        $region14: #{tpu_custom_call.1} parent=11 // pred_check_branch
          %212 = sbr.rel (%p210) target = $region16
        $region15: #{tpu_custom_call.1} parent=11 // pred_region
          _
        $region16: #{tpu_custom_call.1} parent=11 // pred_fallthru
          _
        // Predicated region
        $region17: #{tpu_custom_call.1} parent=11 // pred_check
          %p213 = pneg %p83
        $region18: #{tpu_custom_call.1} parent=11 // pred_check_branch
          %215 = sbr.rel (%p213) target = $region20
        $region19: #{tpu_custom_call.1} parent=11 // pred_region
          _
        $region20: #{tpu_custom_call.1} parent=11 // pred_fallthru
          _
      $region12: #{tpu_custom_call.1} parent=5 // pred_fallthru
        _
      %p216 = scmp.lt.s32.totalorder %s22, 4
      // Predicated region
      $region21: #{tpu_custom_call.1} parent=5 // pred_check
        %p217 = pneg %p216
      $region22: #{tpu_custom_call.1} parent=5 // pred_check_branch
        %219 = sbr.rel (%p217) target = $region24
      $region23: #{tpu_custom_call.1} parent=5 // pred_region
        // Predicated region
        $region25: #{tpu_custom_call.1} parent=23 // pred_check
          %p220 = pneg %p105
        $region26: #{tpu_custom_call.1} parent=23 // pred_check_branch
          %222 = sbr.rel (%p220) target = $region28
        $region27: #{tpu_custom_call.1} parent=23 // pred_region
          %s223 = sand.u32 %s95, 1
          %s224 = scalar_lea.sflag [#allocation8], %s223
          %s225 = sand.u32 %s95, 1
          %s226 = smul.addr %s225, 128
          %s227 = scalar_lea.vmem [#allocation7], %s226
          %s228 = smul.u32 32, %s30
          %s230 = ssub.s32 2048, 2048
          %231 = vsyncadd %s224, %s230
          %s232 = smul.addr %s29, 32
          %s233 = sadd.s32 %s228, %s232
          %s234 = smul.addr %s233, 64
          %s235 = scalar_lea.hbm %s2, %s234
          %s236 = sshll.u32 %s227, 4
          %s237 = int_to_ptr.vmem [resolvable:$true] %s236
          %242 = dma.hbm_to_vmem [thread:$0]  %s235, 2048, %s237, %s224, 64, 64, 4
        $region28: #{tpu_custom_call.1} parent=23 // pred_fallthru
          _
        // Predicated region
        $region29: #{tpu_custom_call.1} parent=23 // pred_check
          %p243 = pneg %p133
        $region30: #{tpu_custom_call.1} parent=23 // pred_check_branch
          %245 = sbr.rel (%p243) target = $region32
        $region31: #{tpu_custom_call.1} parent=23 // pred_region
          %s246 = sand.u32 %s22, 1
          %s247 = scalar_lea.sflag [#allocation11], %s246
          %s248 = sand.u32 %s123, 1
          %s249 = smul.addr %s248, 128
          %s250 = scalar_lea.vmem [#allocation10], %s249
          %s251 = smul.u32 32, %s31
          %s253 = ssub.s32 2048, 2048
          %254 = vsyncadd %s247, %s253
          %s255 = smul.addr %s29, 64
          %s256 = sadd.s32 %s251, %s255
          %s257 = smul.addr %s256, 64
          %s258 = scalar_lea.hbm %s3, %s257
          %s259 = sshll.u32 %s250, 4
          %s260 = int_to_ptr.vmem [resolvable:$true] %s259
          %265 = dma.hbm_to_vmem [thread:$0]  %s258, 2048, %s260, %s247, 64, 64, 4
        $region32: #{tpu_custom_call.1} parent=23 // pred_fallthru
          _
        // Predicated region
        $region33: #{tpu_custom_call.1} parent=23 // pred_check
          %p266 = pneg %p161
        $region34: #{tpu_custom_call.1} parent=23 // pred_check_branch
          %268 = sbr.rel (%p266) target = $region36
        $region35: #{tpu_custom_call.1} parent=23 // pred_region
          %s269 = sand.u32 %s22, 1
          %s270 = scalar_lea.sflag [#allocation11], %s269
          %s271 = sand.u32 %s151, 1
          %s272 = smul.addr %s271, 128
          %s273 = scalar_lea.vmem [#allocation12], %s272
          %s274 = smul.u32 32, %s31
          %s276 = ssub.s32 2048, 2048
          %277 = vsyncadd %s270, %s276
          %s278 = smul.addr %s29, 64
          %s279 = sadd.s32 %s274, %s278
          %s280 = smul.addr %s279, 64
          %s281 = scalar_lea.hbm %s4, %s280
          %s282 = sshll.u32 %s273, 4
          %s283 = int_to_ptr.vmem [resolvable:$true] %s282
          %288 = dma.hbm_to_vmem [thread:$0]  %s281, 2048, %s283, %s270, 64, 64, 4
        $region36: #{tpu_custom_call.1} parent=23 // pred_fallthru
          _
      $region24: #{tpu_custom_call.1} parent=5 // pred_fallthru
        _
      %p289 = scmp.le.s32.totalorder 1, %s22
      %p290 = scmp.lt.s32.totalorder %s22, 5
      %p291 = pnand %p289, %p290
      %p292 = pneg %p291
      // Predicated region
      $region37: #{tpu_custom_call.1} parent=5 // pred_check
        _
      $region38: #{tpu_custom_call.1} parent=5 // pred_check_branch
        %294 = sbr.rel (%p291) target = $region40
      $region39: #{tpu_custom_call.1} parent=5 // pred_region
        %s295 = ssub.s32 %s22, 1
        %s296 = sand.u32 %s98, 1
        %s297 = scalar_lea.sflag [#allocation8], %s296
        %s298 = sand.u32 %s98, 1
        %s299 = smul.addr %s298, 128
        %s300 = scalar_lea.vmem [#allocation7], %s299
        // Predicated region
        $region41: #{tpu_custom_call.1} parent=39 // pred_check
          %p301 = pneg %p111
        $region42: #{tpu_custom_call.1} parent=39 // pred_check_branch
          %303 = sbr.rel (%p301) target = $region44
        $region43: #{tpu_custom_call.1} parent=39 // pred_region
          %304 = dma.done %s297, 2048
        $region44: #{tpu_custom_call.1} parent=39 // pred_fallthru
          _
        %s305 = sand.u32 %s27, 1
        %s306 = scalar_lea.sflag [#allocation11], %s305
        %s307 = sand.u32 %s126, 1
        %s308 = smul.addr %s307, 128
        %s309 = scalar_lea.vmem [#allocation10], %s308
        // Predicated region
        $region45: #{tpu_custom_call.1} parent=39 // pred_check
          %p310 = pneg %p139
        $region46: #{tpu_custom_call.1} parent=39 // pred_check_branch
          %312 = sbr.rel (%p310) target = $region48
        $region47: #{tpu_custom_call.1} parent=39 // pred_region
          %313 = dma.done %s306, 2048
        $region48: #{tpu_custom_call.1} parent=39 // pred_fallthru
          _
        %s314 = sand.u32 %s27, 1
        %s315 = scalar_lea.sflag [#allocation11], %s314
        %s316 = sand.u32 %s154, 1
        %s317 = smul.addr %s316, 128
        %s318 = scalar_lea.vmem [#allocation12], %s317
        // Predicated region
        $region49: #{tpu_custom_call.1} parent=39 // pred_check
          %p319 = pneg %p167
        $region50: #{tpu_custom_call.1} parent=39 // pred_check_branch
          %321 = sbr.rel (%p319) target = $region52
        $region51: #{tpu_custom_call.1} parent=39 // pred_region
          %322 = dma.done %s315, 2048
        $region52: #{tpu_custom_call.1} parent=39 // pred_fallthru
          _
        %p323 = pneg %p62
        %p324 = pneg %p59
        %p325 = pneg %p83
        %p326 = pneg %p80
        %s327 = sand.u32 %s98, 1
        %s328 = scalar_lea.sflag [#allocation8], %s327
        %s329 = sand.u32 %s98, 1
        %s330 = smul.addr %s329, 128
        %s331 = scalar_lea.vmem [#allocation7], %s330
        %p332 = pneg %p111
        %p333 = pneg %p108
        %s334 = sand.u32 %s27, 1
        %s335 = scalar_lea.sflag [#allocation11], %s334
        %s336 = sand.u32 %s126, 1
        %s337 = smul.addr %s336, 128
        %s338 = scalar_lea.vmem [#allocation10], %s337
        %p339 = pneg %p139
        %p340 = pneg %p136
        %s341 = sand.u32 %s27, 1
        %s342 = scalar_lea.sflag [#allocation11], %s341
        %s343 = sand.u32 %s154, 1
        %s344 = smul.addr %s343, 128
        %s345 = scalar_lea.vmem [#allocation12], %s344
        %p346 = pneg %p167
        %p347 = pneg %p164
        %p348 = pneg %p195
        %p349 = pneg %p192
        %s350 = sand.u32 %s182, 1
        %s351 = scalar_lea.sflag [#allocation9], %s350
        %s352 = sand.u32 %s182, 1
        %s353 = smul.addr %s352, 128
        %s354 = scalar_lea.vmem [#allocation13], %s353
        %s355 = smul.u32 32, %s33
        %s356 = smul.u32 32, %s34
        %s357 = smul.u32 32, %s34
        %s358 = smul.u32 32, %s33
        %p360 = scmp.eq.s32.totalorder %s34, 0
        // Predicated region
        $region53: #{tpu_custom_call.1} parent=39 // pred_check
          %p361 = pneg %p360
        $region54: #{tpu_custom_call.1} parent=39 // pred_check_branch
          %363 = sbr.rel (%p361) target = $region56
        $region55: #{tpu_custom_call.1} parent=39 // pred_region
          %vm364 = vcmask 7168
          %365 = vst.msk [vmem:[#allocation2] sm:$0xff] %vm364, -inf
          %366 = vst.msk [vmem:[#allocation2 + $0x8] sm:$0xff] %vm364, -inf
          %367 = vst.msk [vmem:[#allocation2 + $0x10] sm:$0xff] %vm364, -inf
          %368 = vst.msk [vmem:[#allocation2 + $0x18] sm:$0xff] %vm364, -inf
          %369 = vst.msk [vmem:[#allocation2 + $0x20] sm:$0xff] %vm364, -inf
          %370 = vst.msk [vmem:[#allocation2 + $0x28] sm:$0xff] %vm364, -inf
          %371 = vst.msk [vmem:[#allocation2 + $0x30] sm:$0xff] %vm364, -inf
          %372 = vst.msk [vmem:[#allocation2 + $0x38] sm:$0xff] %vm364, -inf
          %373 = vst.msk [vmem:[#allocation2 + $0x40] sm:$0xff] %vm364, -inf
          %374 = vst.msk [vmem:[#allocation2 + $0x48] sm:$0xff] %vm364, -inf
          %375 = vst.msk [vmem:[#allocation2 + $0x50] sm:$0xff] %vm364, -inf
          %376 = vst.msk [vmem:[#allocation2 + $0x58] sm:$0xff] %vm364, -inf
          %377 = vst.msk [vmem:[#allocation2 + $0x60] sm:$0xff] %vm364, -inf
          %378 = vst.msk [vmem:[#allocation2 + $0x68] sm:$0xff] %vm364, -inf
          %379 = vst.msk [vmem:[#allocation2 + $0x70] sm:$0xff] %vm364, -inf
          %380 = vst.msk [vmem:[#allocation2 + $0x78] sm:$0xff] %vm364, -inf
          %381 = vst.msk [vmem:[#allocation2 + $0x80] sm:$0xff] %vm364, -inf
          %382 = vst.msk [vmem:[#allocation2 + $0x88] sm:$0xff] %vm364, -inf
          %383 = vst.msk [vmem:[#allocation2 + $0x90] sm:$0xff] %vm364, -inf
          %384 = vst.msk [vmem:[#allocation2 + $0x98] sm:$0xff] %vm364, -inf
          %385 = vst.msk [vmem:[#allocation2 + $0xa0] sm:$0xff] %vm364, -inf
          %386 = vst.msk [vmem:[#allocation2 + $0xa8] sm:$0xff] %vm364, -inf
          %387 = vst.msk [vmem:[#allocation2 + $0xb0] sm:$0xff] %vm364, -inf
          %388 = vst.msk [vmem:[#allocation2 + $0xb8] sm:$0xff] %vm364, -inf
          %389 = vst.msk [vmem:[#allocation2 + $0xc0] sm:$0xff] %vm364, -inf
          %390 = vst.msk [vmem:[#allocation2 + $0xc8] sm:$0xff] %vm364, -inf
          %391 = vst.msk [vmem:[#allocation2 + $0xd0] sm:$0xff] %vm364, -inf
          %392 = vst.msk [vmem:[#allocation2 + $0xd8] sm:$0xff] %vm364, -inf
          %393 = vst.msk [vmem:[#allocation2 + $0xe0] sm:$0xff] %vm364, -inf
          %394 = vst.msk [vmem:[#allocation2 + $0xe8] sm:$0xff] %vm364, -inf
          %395 = vst.msk [vmem:[#allocation2 + $0xf0] sm:$0xff] %vm364, -inf
          %396 = vst.msk [vmem:[#allocation2 + $0xf8] sm:$0xff] %vm364, -inf
          %397 = vst.msk [vmem:[#allocation3] sm:$0xff] %vm364, 0.0
          %398 = vst.msk [vmem:[#allocation3 + $0x8] sm:$0xff] %vm364, 0.0
          %399 = vst.msk [vmem:[#allocation3 + $0x10] sm:$0xff] %vm364, 0.0
          %400 = vst.msk [vmem:[#allocation3 + $0x18] sm:$0xff] %vm364, 0.0
          %401 = vst.msk [vmem:[#allocation3 + $0x20] sm:$0xff] %vm364, 0.0
          %402 = vst.msk [vmem:[#allocation3 + $0x28] sm:$0xff] %vm364, 0.0
          %403 = vst.msk [vmem:[#allocation3 + $0x30] sm:$0xff] %vm364, 0.0
          %404 = vst.msk [vmem:[#allocation3 + $0x38] sm:$0xff] %vm364, 0.0
          %405 = vst.msk [vmem:[#allocation3 + $0x40] sm:$0xff] %vm364, 0.0
          %406 = vst.msk [vmem:[#allocation3 + $0x48] sm:$0xff] %vm364, 0.0
          %407 = vst.msk [vmem:[#allocation3 + $0x50] sm:$0xff] %vm364, 0.0
          %408 = vst.msk [vmem:[#allocation3 + $0x58] sm:$0xff] %vm364, 0.0
          %409 = vst.msk [vmem:[#allocation3 + $0x60] sm:$0xff] %vm364, 0.0
          %410 = vst.msk [vmem:[#allocation3 + $0x68] sm:$0xff] %vm364, 0.0
          %411 = vst.msk [vmem:[#allocation3 + $0x70] sm:$0xff] %vm364, 0.0
          %412 = vst.msk [vmem:[#allocation3 + $0x78] sm:$0xff] %vm364, 0.0
          %413 = vst.msk [vmem:[#allocation3 + $0x80] sm:$0xff] %vm364, 0.0
          %414 = vst.msk [vmem:[#allocation3 + $0x88] sm:$0xff] %vm364, 0.0
          %415 = vst.msk [vmem:[#allocation3 + $0x90] sm:$0xff] %vm364, 0.0
          %416 = vst.msk [vmem:[#allocation3 + $0x98] sm:$0xff] %vm364, 0.0
          %417 = vst.msk [vmem:[#allocation3 + $0xa0] sm:$0xff] %vm364, 0.0
          %418 = vst.msk [vmem:[#allocation3 + $0xa8] sm:$0xff] %vm364, 0.0
          %419 = vst.msk [vmem:[#allocation3 + $0xb0] sm:$0xff] %vm364, 0.0
          %420 = vst.msk [vmem:[#allocation3 + $0xb8] sm:$0xff] %vm364, 0.0
          %421 = vst.msk [vmem:[#allocation3 + $0xc0] sm:$0xff] %vm364, 0.0
          %422 = vst.msk [vmem:[#allocation3 + $0xc8] sm:$0xff] %vm364, 0.0
          %423 = vst.msk [vmem:[#allocation3 + $0xd0] sm:$0xff] %vm364, 0.0
          %424 = vst.msk [vmem:[#allocation3 + $0xd8] sm:$0xff] %vm364, 0.0
          %425 = vst.msk [vmem:[#allocation3 + $0xe0] sm:$0xff] %vm364, 0.0
          %426 = vst.msk [vmem:[#allocation3 + $0xe8] sm:$0xff] %vm364, 0.0
          %427 = vst.msk [vmem:[#allocation3 + $0xf0] sm:$0xff] %vm364, 0.0
          %428 = vst.msk [vmem:[#allocation3 + $0xf8] sm:$0xff] %vm364, 0.0
          %429 = vst [vmem:[#allocation4] sm:$0xff] 0.0
          %430 = vst [vmem:[#allocation4 + $0x8] sm:$0xff] 0.0
          %431 = vst [vmem:[#allocation4 + $0x10] sm:$0xff] 0.0
          %432 = vst [vmem:[#allocation4 + $0x18] sm:$0xff] 0.0
          %433 = vst [vmem:[#allocation4 + $0x20] sm:$0xff] 0.0
          %434 = vst [vmem:[#allocation4 + $0x28] sm:$0xff] 0.0
          %435 = vst [vmem:[#allocation4 + $0x30] sm:$0xff] 0.0
          %436 = vst [vmem:[#allocation4 + $0x38] sm:$0xff] 0.0
          %437 = vst [vmem:[#allocation4 + $0x40] sm:$0xff] 0.0
          %438 = vst [vmem:[#allocation4 + $0x48] sm:$0xff] 0.0
          %439 = vst [vmem:[#allocation4 + $0x50] sm:$0xff] 0.0
          %440 = vst [vmem:[#allocation4 + $0x58] sm:$0xff] 0.0
          %441 = vst [vmem:[#allocation4 + $0x60] sm:$0xff] 0.0
          %442 = vst [vmem:[#allocation4 + $0x68] sm:$0xff] 0.0
          %443 = vst [vmem:[#allocation4 + $0x70] sm:$0xff] 0.0
          %444 = vst [vmem:[#allocation4 + $0x78] sm:$0xff] 0.0
          %445 = vst [vmem:[#allocation4 + $0x80] sm:$0xff] 0.0
          %446 = vst [vmem:[#allocation4 + $0x88] sm:$0xff] 0.0
          %447 = vst [vmem:[#allocation4 + $0x90] sm:$0xff] 0.0
          %448 = vst [vmem:[#allocation4 + $0x98] sm:$0xff] 0.0
          %449 = vst [vmem:[#allocation4 + $0xa0] sm:$0xff] 0.0
          %450 = vst [vmem:[#allocation4 + $0xa8] sm:$0xff] 0.0
          %451 = vst [vmem:[#allocation4 + $0xb0] sm:$0xff] 0.0
          %452 = vst [vmem:[#allocation4 + $0xb8] sm:$0xff] 0.0
          %453 = vst [vmem:[#allocation4 + $0xc0] sm:$0xff] 0.0
          %454 = vst [vmem:[#allocation4 + $0xc8] sm:$0xff] 0.0
          %455 = vst [vmem:[#allocation4 + $0xd0] sm:$0xff] 0.0
          %456 = vst [vmem:[#allocation4 + $0xd8] sm:$0xff] 0.0
          %457 = vst [vmem:[#allocation4 + $0xe0] sm:$0xff] 0.0
          %458 = vst [vmem:[#allocation4 + $0xe8] sm:$0xff] 0.0
          %459 = vst [vmem:[#allocation4 + $0xf0] sm:$0xff] 0.0
          %460 = vst [vmem:[#allocation4 + $0xf8] sm:$0xff] 0.0
        $region56: #{tpu_custom_call.1} parent=39 // pred_fallthru
          _
        %s461 = sld [smem:[#allocation5]]
        %v462 = vld [vmem:[%s300] sm:$0xf]
        %v463 = vld [vmem:[%s300 + $0x4] sm:$0xf]
        %v464 = vld [vmem:[%s300 + $0x8] sm:$0xf]
        %v465 = vld [vmem:[%s300 + $0xc] sm:$0xf]
        %v466 = vld [vmem:[%s300 + $0x10] sm:$0xf]
        %v467 = vld [vmem:[%s300 + $0x14] sm:$0xf]
        %v468 = vld [vmem:[%s300 + $0x18] sm:$0xf]
        %v469 = vld [vmem:[%s300 + $0x1c] sm:$0xf]
        %v470 = vld [vmem:[%s300 + $0x20] sm:$0xf]
        %v471 = vld [vmem:[%s300 + $0x24] sm:$0xf]
        %v472 = vld [vmem:[%s300 + $0x28] sm:$0xf]
        %v473 = vld [vmem:[%s300 + $0x2c] sm:$0xf]
        %v474 = vld [vmem:[%s300 + $0x30] sm:$0xf]
        %v475 = vld [vmem:[%s300 + $0x34] sm:$0xf]
        %v476 = vld [vmem:[%s300 + $0x38] sm:$0xf]
        %v477 = vld [vmem:[%s300 + $0x3c] sm:$0xf]
        %v478 = vld [vmem:[%s300 + $0x40] sm:$0xf]
        %v479 = vld [vmem:[%s300 + $0x44] sm:$0xf]
        %v480 = vld [vmem:[%s300 + $0x48] sm:$0xf]
        %v481 = vld [vmem:[%s300 + $0x4c] sm:$0xf]
        %v482 = vld [vmem:[%s300 + $0x50] sm:$0xf]
        %v483 = vld [vmem:[%s300 + $0x54] sm:$0xf]
        %v484 = vld [vmem:[%s300 + $0x58] sm:$0xf]
        %v485 = vld [vmem:[%s300 + $0x5c] sm:$0xf]
        %v486 = vld [vmem:[%s300 + $0x60] sm:$0xf]
        %v487 = vld [vmem:[%s300 + $0x64] sm:$0xf]
        %v488 = vld [vmem:[%s300 + $0x68] sm:$0xf]
        %v489 = vld [vmem:[%s300 + $0x6c] sm:$0xf]
        %v490 = vld [vmem:[%s300 + $0x70] sm:$0xf]
        %v491 = vld [vmem:[%s300 + $0x74] sm:$0xf]
        %v492 = vld [vmem:[%s300 + $0x78] sm:$0xf]
        %v493 = vld [vmem:[%s300 + $0x7c] sm:$0xf]
        %v494 = vunpack.c.l.bf16 %v462
        %v495 = vunpack.c.l.bf16 %v463
        %v496 = vunpack.c.l.bf16 %v464
        %v497 = vunpack.c.l.bf16 %v465
        %v498 = vunpack.c.l.bf16 %v466
        %v499 = vunpack.c.l.bf16 %v467
        %v500 = vunpack.c.l.bf16 %v468
        %v501 = vunpack.c.l.bf16 %v469
        %v502 = vunpack.c.l.bf16 %v470
        %v503 = vunpack.c.l.bf16 %v471
        %v504 = vunpack.c.l.bf16 %v472
        %v505 = vunpack.c.l.bf16 %v473
        %v506 = vunpack.c.l.bf16 %v474
        %v507 = vunpack.c.l.bf16 %v475
        %v508 = vunpack.c.l.bf16 %v476
        %v509 = vunpack.c.l.bf16 %v477
        %v510 = vunpack.c.l.bf16 %v478
        %v511 = vunpack.c.l.bf16 %v479
        %v512 = vunpack.c.l.bf16 %v480
        %v513 = vunpack.c.l.bf16 %v481
        %v514 = vunpack.c.l.bf16 %v482
        %v515 = vunpack.c.l.bf16 %v483
        %v516 = vunpack.c.l.bf16 %v484
        %v517 = vunpack.c.l.bf16 %v485
        %v518 = vunpack.c.l.bf16 %v486
        %v519 = vunpack.c.l.bf16 %v487
        %v520 = vunpack.c.l.bf16 %v488
        %v521 = vunpack.c.l.bf16 %v489
        %v522 = vunpack.c.l.bf16 %v490
        %v523 = vunpack.c.l.bf16 %v491
        %v524 = vunpack.c.l.bf16 %v492
        %v525 = vunpack.c.l.bf16 %v493
        %v526 = vstv %s461
        %v527 = vmul.f32 %v494, %v526
        %v528 = vmul.f32 %v495, %v526
        %v529 = vmul.f32 %v496, %v526
        %v530 = vmul.f32 %v497, %v526
        %v531 = vmul.f32 %v498, %v526
        %v532 = vmul.f32 %v499, %v526
        %v533 = vmul.f32 %v500, %v526
        %v534 = vmul.f32 %v501, %v526
        %v535 = vmul.f32 %v502, %v526
        %v536 = vmul.f32 %v503, %v526
        %v537 = vmul.f32 %v504, %v526
        %v538 = vmul.f32 %v505, %v526
        %v539 = vmul.f32 %v506, %v526
        %v540 = vmul.f32 %v507, %v526
        %v541 = vmul.f32 %v508, %v526
        %v542 = vmul.f32 %v509, %v526
        %v543 = vmul.f32 %v510, %v526
        %v544 = vmul.f32 %v511, %v526
        %v545 = vmul.f32 %v512, %v526
        %v546 = vmul.f32 %v513, %v526
        %v547 = vmul.f32 %v514, %v526
        %v548 = vmul.f32 %v515, %v526
        %v549 = vmul.f32 %v516, %v526
        %v550 = vmul.f32 %v517, %v526
        %v551 = vmul.f32 %v518, %v526
        %v552 = vmul.f32 %v519, %v526
        %v553 = vmul.f32 %v520, %v526
        %v554 = vmul.f32 %v521, %v526
        %v555 = vmul.f32 %v522, %v526
        %v556 = vmul.f32 %v523, %v526
        %v557 = vmul.f32 %v524, %v526
        %v558 = vmul.f32 %v525, %v526
        %v559 = vpack.c.bf16 %v528, %v527
        %v560 = vpack.c.bf16 %v530, %v529
        %v561 = vpack.c.bf16 %v532, %v531
        %v562 = vpack.c.bf16 %v534, %v533
        %v563 = vpack.c.bf16 %v536, %v535
        %v564 = vpack.c.bf16 %v538, %v537
        %v565 = vpack.c.bf16 %v540, %v539
        %v566 = vpack.c.bf16 %v542, %v541
        %v567 = vpack.c.bf16 %v544, %v543
        %v568 = vpack.c.bf16 %v546, %v545
        %v569 = vpack.c.bf16 %v548, %v547
        %v570 = vpack.c.bf16 %v550, %v549
        %v571 = vpack.c.bf16 %v552, %v551
        %v572 = vpack.c.bf16 %v554, %v553
        %v573 = vpack.c.bf16 %v556, %v555
        %v574 = vpack.c.bf16 %v558, %v557
        %v575 = vld [vmem:[%s309] sm:$0xf]
        %v576 = vld [vmem:[%s309 + $0x4] sm:$0xf]
        %v577 = vld [vmem:[%s309 + $0x8] sm:$0xf]
        %v578 = vld [vmem:[%s309 + $0xc] sm:$0xf]
        %v579 = vld [vmem:[%s309 + $0x10] sm:$0xf]
        %v580 = vld [vmem:[%s309 + $0x14] sm:$0xf]
        %v581 = vld [vmem:[%s309 + $0x18] sm:$0xf]
        %v582 = vld [vmem:[%s309 + $0x1c] sm:$0xf]
        %v583 = vld [vmem:[%s309 + $0x20] sm:$0xf]
        %v584 = vld [vmem:[%s309 + $0x24] sm:$0xf]
        %v585 = vld [vmem:[%s309 + $0x28] sm:$0xf]
        %v586 = vld [vmem:[%s309 + $0x2c] sm:$0xf]
        %v587 = vld [vmem:[%s309 + $0x30] sm:$0xf]
        %v588 = vld [vmem:[%s309 + $0x34] sm:$0xf]
        %v589 = vld [vmem:[%s309 + $0x38] sm:$0xf]
        %v590 = vld [vmem:[%s309 + $0x3c] sm:$0xf]
        %v591 = vld [vmem:[%s309 + $0x40] sm:$0xf]
        %v592 = vld [vmem:[%s309 + $0x44] sm:$0xf]
        %v593 = vld [vmem:[%s309 + $0x48] sm:$0xf]
        %v594 = vld [vmem:[%s309 + $0x4c] sm:$0xf]
        %v595 = vld [vmem:[%s309 + $0x50] sm:$0xf]
        %v596 = vld [vmem:[%s309 + $0x54] sm:$0xf]
        %v597 = vld [vmem:[%s309 + $0x58] sm:$0xf]
        %v598 = vld [vmem:[%s309 + $0x5c] sm:$0xf]
        %v599 = vld [vmem:[%s309 + $0x60] sm:$0xf]
        %v600 = vld [vmem:[%s309 + $0x64] sm:$0xf]
        %v601 = vld [vmem:[%s309 + $0x68] sm:$0xf]
        %v602 = vld [vmem:[%s309 + $0x6c] sm:$0xf]
        %v603 = vld [vmem:[%s309 + $0x70] sm:$0xf]
        %v604 = vld [vmem:[%s309 + $0x74] sm:$0xf]
        %v605 = vld [vmem:[%s309 + $0x78] sm:$0xf]
        %v606 = vld [vmem:[%s309 + $0x7c] sm:$0xf]
        %v607 = vld [vmem:[%s318] sm:$0xf]
        %v608 = vld [vmem:[%s318 + $0x4] sm:$0xf]
        %v609 = vld [vmem:[%s318 + $0x8] sm:$0xf]
        %v610 = vld [vmem:[%s318 + $0xc] sm:$0xf]
        %v611 = vld [vmem:[%s318 + $0x10] sm:$0xf]
        %v612 = vld [vmem:[%s318 + $0x14] sm:$0xf]
        %v613 = vld [vmem:[%s318 + $0x18] sm:$0xf]
        %v614 = vld [vmem:[%s318 + $0x1c] sm:$0xf]
        %v615 = vld [vmem:[%s318 + $0x20] sm:$0xf]
        %v616 = vld [vmem:[%s318 + $0x24] sm:$0xf]
        %v617 = vld [vmem:[%s318 + $0x28] sm:$0xf]
        %v618 = vld [vmem:[%s318 + $0x2c] sm:$0xf]
        %v619 = vld [vmem:[%s318 + $0x30] sm:$0xf]
        %v620 = vld [vmem:[%s318 + $0x34] sm:$0xf]
        %v621 = vld [vmem:[%s318 + $0x38] sm:$0xf]
        %v622 = vld [vmem:[%s318 + $0x3c] sm:$0xf]
        %v623 = vld [vmem:[%s318 + $0x40] sm:$0xf]
        %v624 = vld [vmem:[%s318 + $0x44] sm:$0xf]
        %v625 = vld [vmem:[%s318 + $0x48] sm:$0xf]
        %v626 = vld [vmem:[%s318 + $0x4c] sm:$0xf]
        %v627 = vld [vmem:[%s318 + $0x50] sm:$0xf]
        %v628 = vld [vmem:[%s318 + $0x54] sm:$0xf]
        %v629 = vld [vmem:[%s318 + $0x58] sm:$0xf]
        %v630 = vld [vmem:[%s318 + $0x5c] sm:$0xf]
        %v631 = vld [vmem:[%s318 + $0x60] sm:$0xf]
        %v632 = vld [vmem:[%s318 + $0x64] sm:$0xf]
        %v633 = vld [vmem:[%s318 + $0x68] sm:$0xf]
        %v634 = vld [vmem:[%s318 + $0x6c] sm:$0xf]
        %v635 = vld [vmem:[%s318 + $0x70] sm:$0xf]
        %v636 = vld [vmem:[%s318 + $0x74] sm:$0xf]
        %v637 = vld [vmem:[%s318 + $0x78] sm:$0xf]
        %v638 = vld [vmem:[%s318 + $0x7c] sm:$0xf]
        %v671 = vunpack.c.l.b16 %v575
        %v672 = vunpack.c.l.b16 %v576
        %v673 = vunpack.c.l.b16 %v577
        %v674 = vunpack.c.l.b16 %v578
        %v675 = vunpack.c.l.b16 %v579
        %v676 = vunpack.c.l.b16 %v580
        %v677 = vunpack.c.l.b16 %v581
        %v678 = vunpack.c.l.b16 %v582
        %v679 = vunpack.c.l.b16 %v583
        %v680 = vunpack.c.l.b16 %v584
        %v681 = vunpack.c.l.b16 %v585
        %v682 = vunpack.c.l.b16 %v586
        %v683 = vunpack.c.l.b16 %v587
        %v684 = vunpack.c.l.b16 %v588
        %v685 = vunpack.c.l.b16 %v589
        %v686 = vunpack.c.l.b16 %v590
        %v687 = vunpack.c.l.b16 %v591
        %v688 = vunpack.c.l.b16 %v592
        %v689 = vunpack.c.l.b16 %v593
        %v690 = vunpack.c.l.b16 %v594
        %v691 = vunpack.c.l.b16 %v595
        %v692 = vunpack.c.l.b16 %v596
        %v693 = vunpack.c.l.b16 %v597
        %v694 = vunpack.c.l.b16 %v598
        %v695 = vunpack.c.l.b16 %v599
        %v696 = vunpack.c.l.b16 %v600
        %v697 = vunpack.c.l.b16 %v601
        %v698 = vunpack.c.l.b16 %v602
        %v699 = vunpack.c.l.b16 %v603
        %v700 = vunpack.c.l.b16 %v604
        %v701 = vunpack.c.l.b16 %v605
        %v702 = vunpack.c.l.b16 %v606
        %v703 = vpack.c.b16 %v672, %v671
        %v704 = vpack.c.b16 %v674, %v673
        %v705 = vpack.c.b16 %v676, %v675
        %v706 = vpack.c.b16 %v678, %v677
        %v707 = vpack.c.b16 %v680, %v679
        %v708 = vpack.c.b16 %v682, %v681
        %v709 = vpack.c.b16 %v684, %v683
        %v710 = vpack.c.b16 %v686, %v685
        %v711 = vpack.c.b16 %v688, %v687
        %v712 = vpack.c.b16 %v690, %v689
        %v713 = vpack.c.b16 %v692, %v691
        %v714 = vpack.c.b16 %v694, %v693
        %v715 = vpack.c.b16 %v696, %v695
        %v716 = vpack.c.b16 %v698, %v697
        %v717 = vpack.c.b16 %v700, %v699
        %v718 = vpack.c.b16 %v702, %v701
        %735 = vmatprep.subr.bf16.mxu0 0
        %736 = vmatpush1.bf16.xpose.msra.mxu0 %v703
        %737 = vmatprep.subr.bf16.mxu0 0
        %738 = vmatpush1.bf16.xpose.msra.mxu0 %v704
        %739 = vmatprep.subr.bf16.mxu0 0
        %740 = vmatpush1.bf16.xpose.msra.mxu0 %v705
        %741 = vmatprep.subr.bf16.mxu0 0
        %742 = vmatpush1.bf16.xpose.msra.mxu0 %v706
        %743 = vmatprep.subr.bf16.mxu0 0
        %744 = vmatpush1.bf16.xpose.msra.mxu0 %v707
        %745 = vmatprep.subr.bf16.mxu0 0
        %746 = vmatpush1.bf16.xpose.msra.mxu0 %v708
        %747 = vmatprep.subr.bf16.mxu0 0
        %748 = vmatpush1.bf16.xpose.msra.mxu0 %v709
        %749 = vmatprep.subr.bf16.mxu0 0
        %750 = vmatpush1.bf16.xpose.msra.mxu0 %v710
        %751 = vmatprep.subr.bf16.mxu0 0
        %752 = vmatpush1.bf16.xpose.msra.mxu0 %v711
        %753 = vmatprep.subr.bf16.mxu0 0
        %754 = vmatpush1.bf16.xpose.msra.mxu0 %v712
        %755 = vmatprep.subr.bf16.mxu0 0
        %756 = vmatpush1.bf16.xpose.msra.mxu0 %v713
        %757 = vmatprep.subr.bf16.mxu0 0
        %758 = vmatpush1.bf16.xpose.msra.mxu0 %v714
        %759 = vmatprep.subr.bf16.mxu0 0
        %760 = vmatpush1.bf16.xpose.msra.mxu0 %v715
        %761 = vmatprep.subr.bf16.mxu0 0
        %762 = vmatpush1.bf16.xpose.msra.mxu0 %v716
        %763 = vmatprep.subr.bf16.mxu0 0
        %764 = vmatpush1.bf16.xpose.msra.mxu0 %v717
        %765 = vmatprep.subr.bf16.mxu0 0
        %766 = vmatpush1.bf16.xpose.msra.mxu0 %v718
        %767 = vmatprep.mubr.bf16.mxu0 0
        %768 = vmatmul.mubr.bf16.gmra.mrb[0].mxu0 %v559
        %v769 = vpop.f32.mrb[0].mxu0
        %v770 = vadd.f32 0.0, %v769
        %v771 = vpop.f32.mrb[0].mxu0
        %v772 = vadd.f32 0.0, %v771
        %v773 = vpop.f32.mrb[0].mxu0
        %v774 = vadd.f32 0.0, %v773
        %v775 = vpop.f32.mrb[0].mxu0
        %v776 = vadd.f32 0.0, %v775
        %777 = vmatprep.mubr.bf16.mxu0 0
        %778 = vmatmul.mubr.bf16.gmra.mrb[0].mxu0 %v560
        %v779 = vpop.f32.mrb[0].mxu0
        %v780 = vadd.f32 0.0, %v779
        %v781 = vpop.f32.mrb[0].mxu0
        %v782 = vadd.f32 0.0, %v781
        %v783 = vpop.f32.mrb[0].mxu0
        %v784 = vadd.f32 0.0, %v783
        %v785 = vpop.f32.mrb[0].mxu0
        %v786 = vadd.f32 0.0, %v785
        %787 = vmatprep.mubr.bf16.mxu0 0
        %788 = vmatmul.mubr.bf16.gmra.mrb[0].mxu0 %v561
        %v789 = vpop.f32.mrb[0].mxu0
        %v790 = vadd.f32 0.0, %v789
        %v791 = vpop.f32.mrb[0].mxu0
        %v792 = vadd.f32 0.0, %v791
        %v793 = vpop.f32.mrb[0].mxu0
        %v794 = vadd.f32 0.0, %v793
        %v795 = vpop.f32.mrb[0].mxu0
        %v796 = vadd.f32 0.0, %v795
        %797 = vmatprep.mubr.bf16.mxu0 0
        %798 = vmatmul.mubr.bf16.gmra.mrb[0].mxu0 %v562
        %v799 = vpop.f32.mrb[0].mxu0
        %v800 = vadd.f32 0.0, %v799
        %v801 = vpop.f32.mrb[0].mxu0
        %v802 = vadd.f32 0.0, %v801
        %v803 = vpop.f32.mrb[0].mxu0
        %v804 = vadd.f32 0.0, %v803
        %v805 = vpop.f32.mrb[0].mxu0
        %v806 = vadd.f32 0.0, %v805
        %807 = vmatprep.mubr.bf16.mxu0 0
        %808 = vmatmul.mubr.bf16.gmra.mrb[0].mxu0 %v563
        %v809 = vpop.f32.mrb[0].mxu0
        %v810 = vadd.f32 0.0, %v809
        %v811 = vpop.f32.mrb[0].mxu0
        %v812 = vadd.f32 0.0, %v811
        %v813 = vpop.f32.mrb[0].mxu0
        %v814 = vadd.f32 0.0, %v813
        %v815 = vpop.f32.mrb[0].mxu0
        %v816 = vadd.f32 0.0, %v815
        %817 = vmatprep.mubr.bf16.mxu0 0
        %818 = vmatmul.mubr.bf16.gmra.mrb[0].mxu0 %v564
        %v819 = vpop.f32.mrb[0].mxu0
        %v820 = vadd.f32 0.0, %v819
        %v821 = vpop.f32.mrb[0].mxu0
        %v822 = vadd.f32 0.0, %v821
        %v823 = vpop.f32.mrb[0].mxu0
        %v824 = vadd.f32 0.0, %v823
        %v825 = vpop.f32.mrb[0].mxu0
        %v826 = vadd.f32 0.0, %v825
        %827 = vmatprep.mubr.bf16.mxu0 0
        %828 = vmatmul.mubr.bf16.gmra.mrb[0].mxu0 %v565
        %v829 = vpop.f32.mrb[0].mxu0
        %v830 = vadd.f32 0.0, %v829
        %v831 = vpop.f32.mrb[0].mxu0
        %v832 = vadd.f32 0.0, %v831
        %v833 = vpop.f32.mrb[0].mxu0
        %v834 = vadd.f32 0.0, %v833
        %v835 = vpop.f32.mrb[0].mxu0
        %v836 = vadd.f32 0.0, %v835
        %837 = vmatprep.mubr.bf16.mxu0 0
        %838 = vmatmul.mubr.bf16.gmra.mrb[0].mxu0 %v566
        %v839 = vpop.f32.mrb[0].mxu0
        %v840 = vadd.f32 0.0, %v839
        %v841 = vpop.f32.mrb[0].mxu0
        %v842 = vadd.f32 0.0, %v841
        %v843 = vpop.f32.mrb[0].mxu0
        %v844 = vadd.f32 0.0, %v843
        %v845 = vpop.f32.mrb[0].mxu0
        %v846 = vadd.f32 0.0, %v845
        %847 = vmatprep.mubr.bf16.mxu0 0
        %848 = vmatmul.mubr.bf16.gmra.mrb[0].mxu0 %v567
        %v849 = vpop.f32.mrb[0].mxu0
        %v850 = vadd.f32 0.0, %v849
        %v851 = vpop.f32.mrb[0].mxu0
        %v852 = vadd.f32 0.0, %v851
        %v853 = vpop.f32.mrb[0].mxu0
        %v854 = vadd.f32 0.0, %v853
        %v855 = vpop.f32.mrb[0].mxu0
        %v856 = vadd.f32 0.0, %v855
        %857 = vmatprep.mubr.bf16.mxu0 0
        %858 = vmatmul.mubr.bf16.gmra.mrb[0].mxu0 %v568
        %v859 = vpop.f32.mrb[0].mxu0
        %v860 = vadd.f32 0.0, %v859
        %v861 = vpop.f32.mrb[0].mxu0
        %v862 = vadd.f32 0.0, %v861
        %v863 = vpop.f32.mrb[0].mxu0
        %v864 = vadd.f32 0.0, %v863
        %v865 = vpop.f32.mrb[0].mxu0
        %v866 = vadd.f32 0.0, %v865
        %867 = vmatprep.mubr.bf16.mxu0 0
        %868 = vmatmul.mubr.bf16.gmra.mrb[0].mxu0 %v569
        %v869 = vpop.f32.mrb[0].mxu0
        %v870 = vadd.f32 0.0, %v869
        %v871 = vpop.f32.mrb[0].mxu0
        %v872 = vadd.f32 0.0, %v871
        %v873 = vpop.f32.mrb[0].mxu0
        %v874 = vadd.f32 0.0, %v873
        %v875 = vpop.f32.mrb[0].mxu0
        %v876 = vadd.f32 0.0, %v875
        %877 = vmatprep.mubr.bf16.mxu0 0
        %878 = vmatmul.mubr.bf16.gmra.mrb[0].mxu0 %v570
        %v879 = vpop.f32.mrb[0].mxu0
        %v880 = vadd.f32 0.0, %v879
        %v881 = vpop.f32.mrb[0].mxu0
        %v882 = vadd.f32 0.0, %v881
        %v883 = vpop.f32.mrb[0].mxu0
        %v884 = vadd.f32 0.0, %v883
        %v885 = vpop.f32.mrb[0].mxu0
        %v886 = vadd.f32 0.0, %v885
        %887 = vmatprep.mubr.bf16.mxu0 0
        %888 = vmatmul.mubr.bf16.gmra.mrb[0].mxu0 %v571
        %v889 = vpop.f32.mrb[0].mxu0
        %v890 = vadd.f32 0.0, %v889
        %v891 = vpop.f32.mrb[0].mxu0
        %v892 = vadd.f32 0.0, %v891
        %v893 = vpop.f32.mrb[0].mxu0
        %v894 = vadd.f32 0.0, %v893
        %v895 = vpop.f32.mrb[0].mxu0
        %v896 = vadd.f32 0.0, %v895
        %897 = vmatprep.mubr.bf16.mxu0 0
        %898 = vmatmul.mubr.bf16.gmra.mrb[0].mxu0 %v572
        %v899 = vpop.f32.mrb[0].mxu0
        %v900 = vadd.f32 0.0, %v899
        %v901 = vpop.f32.mrb[0].mxu0
        %v902 = vadd.f32 0.0, %v901
        %v903 = vpop.f32.mrb[0].mxu0
        %v904 = vadd.f32 0.0, %v903
        %v905 = vpop.f32.mrb[0].mxu0
        %v906 = vadd.f32 0.0, %v905
        %907 = vmatprep.mubr.bf16.mxu0 0
        %908 = vmatmul.mubr.bf16.gmra.mrb[0].mxu0 %v573
        %v909 = vpop.f32.mrb[0].mxu0
        %v910 = vadd.f32 0.0, %v909
        %v911 = vpop.f32.mrb[0].mxu0
        %v912 = vadd.f32 0.0, %v911
        %v913 = vpop.f32.mrb[0].mxu0
        %v914 = vadd.f32 0.0, %v913
        %v915 = vpop.f32.mrb[0].mxu0
        %v916 = vadd.f32 0.0, %v915
        %917 = vmatprep.mubr.bf16.mxu0 0
        %918 = vmatmul.mubr.bf16.gmra.mrb[0].mxu0 %v574
        %v919 = vpop.f32.mrb[0].mxu0
        %v920 = vadd.f32 0.0, %v919
        %v921 = vpop.f32.mrb[0].mxu0
        %v922 = vadd.f32 0.0, %v921
        %v923 = vpop.f32.mrb[0].mxu0
        %v924 = vadd.f32 0.0, %v923
        %v925 = vpop.f32.mrb[0].mxu0
        %v926 = vadd.f32 0.0, %v925
        %927 = vdwg.mxu0
        %v928 = vld [vmem:[#allocation2] sm:$0xff]
        %v929 = vld [vmem:[#allocation2 + $0x8] sm:$0xff]
        %v930 = vld [vmem:[#allocation2 + $0x10] sm:$0xff]
        %v931 = vld [vmem:[#allocation2 + $0x18] sm:$0xff]
        %v932 = vld [vmem:[#allocation2 + $0x20] sm:$0xff]
        %v933 = vld [vmem:[#allocation2 + $0x28] sm:$0xff]
        %v934 = vld [vmem:[#allocation2 + $0x30] sm:$0xff]
        %v935 = vld [vmem:[#allocation2 + $0x38] sm:$0xff]
        %v936 = vld [vmem:[#allocation2 + $0x40] sm:$0xff]
        %v937 = vld [vmem:[#allocation2 + $0x48] sm:$0xff]
        %v938 = vld [vmem:[#allocation2 + $0x50] sm:$0xff]
        %v939 = vld [vmem:[#allocation2 + $0x58] sm:$0xff]
        %v940 = vld [vmem:[#allocation2 + $0x60] sm:$0xff]
        %v941 = vld [vmem:[#allocation2 + $0x68] sm:$0xff]
        %v942 = vld [vmem:[#allocation2 + $0x70] sm:$0xff]
        %v943 = vld [vmem:[#allocation2 + $0x78] sm:$0xff]
        %v944 = vld [vmem:[#allocation2 + $0x80] sm:$0xff]
        %v945 = vld [vmem:[#allocation2 + $0x88] sm:$0xff]
        %v946 = vld [vmem:[#allocation2 + $0x90] sm:$0xff]
        %v947 = vld [vmem:[#allocation2 + $0x98] sm:$0xff]
        %v948 = vld [vmem:[#allocation2 + $0xa0] sm:$0xff]
        %v949 = vld [vmem:[#allocation2 + $0xa8] sm:$0xff]
        %v950 = vld [vmem:[#allocation2 + $0xb0] sm:$0xff]
        %v951 = vld [vmem:[#allocation2 + $0xb8] sm:$0xff]
        %v952 = vld [vmem:[#allocation2 + $0xc0] sm:$0xff]
        %v953 = vld [vmem:[#allocation2 + $0xc8] sm:$0xff]
        %v954 = vld [vmem:[#allocation2 + $0xd0] sm:$0xff]
        %v955 = vld [vmem:[#allocation2 + $0xd8] sm:$0xff]
        %v956 = vld [vmem:[#allocation2 + $0xe0] sm:$0xff]
        %v957 = vld [vmem:[#allocation2 + $0xe8] sm:$0xff]
        %v958 = vld [vmem:[#allocation2 + $0xf0] sm:$0xff]
        %v959 = vld [vmem:[#allocation2 + $0xf8] sm:$0xff]
        %v960 = vmax.f32 %v770, %v772
        %961 = vmax.xlane.f32.xlu0 %v960
        %v962 = vpop.xlane.xlu0 %961
        %v963 = vmax.f32 %v774, %v776
        %964 = vmax.xlane.f32.xlu0 %v963
        %v965 = vpop.xlane.xlu0 %964
        %v966 = vmax.f32 %v780, %v782
        %967 = vmax.xlane.f32.xlu0 %v966
        %v968 = vpop.xlane.xlu0 %967
        %v969 = vmax.f32 %v784, %v786
        %970 = vmax.xlane.f32.xlu0 %v969
        %v971 = vpop.xlane.xlu0 %970
        %v972 = vmax.f32 %v790, %v792
        %973 = vmax.xlane.f32.xlu0 %v972
        %v974 = vpop.xlane.xlu0 %973
        %v975 = vmax.f32 %v794, %v796
        %976 = vmax.xlane.f32.xlu0 %v975
        %v977 = vpop.xlane.xlu0 %976
        %v978 = vmax.f32 %v800, %v802
        %979 = vmax.xlane.f32.xlu0 %v978
        %v980 = vpop.xlane.xlu0 %979
        %v981 = vmax.f32 %v804, %v806
        %982 = vmax.xlane.f32.xlu0 %v981
        %v983 = vpop.xlane.xlu0 %982
        %v984 = vmax.f32 %v810, %v812
        %985 = vmax.xlane.f32.xlu0 %v984
        %v986 = vpop.xlane.xlu0 %985
        %v987 = vmax.f32 %v814, %v816
        %988 = vmax.xlane.f32.xlu0 %v987
        %v989 = vpop.xlane.xlu0 %988
        %v990 = vmax.f32 %v820, %v822
        %991 = vmax.xlane.f32.xlu0 %v990
        %v992 = vpop.xlane.xlu0 %991
        %v993 = vmax.f32 %v824, %v826
        %994 = vmax.xlane.f32.xlu0 %v993
        %v995 = vpop.xlane.xlu0 %994
        %v996 = vmax.f32 %v830, %v832
        %997 = vmax.xlane.f32.xlu0 %v996
        %v998 = vpop.xlane.xlu0 %997
        %v999 = vmax.f32 %v834, %v836
        %1000 = vmax.xlane.f32.xlu0 %v999
        %v1001 = vpop.xlane.xlu0 %1000
        %v1002 = vmax.f32 %v840, %v842
        %1003 = vmax.xlane.f32.xlu0 %v1002
        %v1004 = vpop.xlane.xlu0 %1003
        %v1005 = vmax.f32 %v844, %v846
        %1006 = vmax.xlane.f32.xlu0 %v1005
        %v1007 = vpop.xlane.xlu0 %1006
        %v1008 = vmax.f32 %v850, %v852
        %1009 = vmax.xlane.f32.xlu0 %v1008
        %v1010 = vpop.xlane.xlu0 %1009
        %v1011 = vmax.f32 %v854, %v856
        %1012 = vmax.xlane.f32.xlu0 %v1011
        %v1013 = vpop.xlane.xlu0 %1012
        %v1014 = vmax.f32 %v860, %v862
        %1015 = vmax.xlane.f32.xlu0 %v1014
        %v1016 = vpop.xlane.xlu0 %1015
        %v1017 = vmax.f32 %v864, %v866
        %1018 = vmax.xlane.f32.xlu0 %v1017
        %v1019 = vpop.xlane.xlu0 %1018
        %v1020 = vmax.f32 %v870, %v872
        %1021 = vmax.xlane.f32.xlu0 %v1020
        %v1022 = vpop.xlane.xlu0 %1021
        %v1023 = vmax.f32 %v874, %v876
        %1024 = vmax.xlane.f32.xlu0 %v1023
        %v1025 = vpop.xlane.xlu0 %1024
        %v1026 = vmax.f32 %v880, %v882
        %1027 = vmax.xlane.f32.xlu0 %v1026
        %v1028 = vpop.xlane.xlu0 %1027
        %v1029 = vmax.f32 %v884, %v886
        %1030 = vmax.xlane.f32.xlu0 %v1029
        %v1031 = vpop.xlane.xlu0 %1030
        %v1032 = vmax.f32 %v890, %v892
        %1033 = vmax.xlane.f32.xlu0 %v1032
        %v1034 = vpop.xlane.xlu0 %1033
        %v1035 = vmax.f32 %v894, %v896
        %1036 = vmax.xlane.f32.xlu0 %v1035
        %v1037 = vpop.xlane.xlu0 %1036
        %v1038 = vmax.f32 %v900, %v902
        %1039 = vmax.xlane.f32.xlu0 %v1038
        %v1040 = vpop.xlane.xlu0 %1039
        %v1041 = vmax.f32 %v904, %v906
        %1042 = vmax.xlane.f32.xlu0 %v1041
        %v1043 = vpop.xlane.xlu0 %1042
        %v1044 = vmax.f32 %v910, %v912
        %1045 = vmax.xlane.f32.xlu0 %v1044
        %v1046 = vpop.xlane.xlu0 %1045
        %v1047 = vmax.f32 %v914, %v916
        %1048 = vmax.xlane.f32.xlu0 %v1047
        %v1049 = vpop.xlane.xlu0 %1048
        %v1050 = vmax.f32 %v920, %v922
        %1051 = vmax.xlane.f32.xlu0 %v1050
        %v1052 = vpop.xlane.xlu0 %1051
        %v1053 = vmax.f32 %v924, %v926
        %1054 = vmax.xlane.f32.xlu0 %v1053
        %v1055 = vpop.xlane.xlu0 %1054
        %v1056 = vmax.f32 %v928, %v962
        %v1057 = vmax.f32 %v929, %v965
        %v1058 = vmax.f32 %v930, %v968
        %v1059 = vmax.f32 %v931, %v971
        %v1060 = vmax.f32 %v932, %v974
        %v1061 = vmax.f32 %v933, %v977
        %v1062 = vmax.f32 %v934, %v980
        %v1063 = vmax.f32 %v935, %v983
        %v1064 = vmax.f32 %v936, %v986
        %v1065 = vmax.f32 %v937, %v989
        %v1066 = vmax.f32 %v938, %v992
        %v1067 = vmax.f32 %v939, %v995
        %v1068 = vmax.f32 %v940, %v998
        %v1069 = vmax.f32 %v941, %v1001
        %v1070 = vmax.f32 %v942, %v1004
        %v1071 = vmax.f32 %v943, %v1007
        %v1072 = vmax.f32 %v944, %v1010
        %v1073 = vmax.f32 %v945, %v1013
        %v1074 = vmax.f32 %v946, %v1016
        %v1075 = vmax.f32 %v947, %v1019
        %v1076 = vmax.f32 %v948, %v1022
        %v1077 = vmax.f32 %v949, %v1025
        %v1078 = vmax.f32 %v950, %v1028
        %v1079 = vmax.f32 %v951, %v1031
        %v1080 = vmax.f32 %v952, %v1034
        %v1081 = vmax.f32 %v953, %v1037
        %v1082 = vmax.f32 %v954, %v1040
        %v1083 = vmax.f32 %v955, %v1043
        %v1084 = vmax.f32 %v956, %v1046
        %v1085 = vmax.f32 %v957, %v1049
        %v1086 = vmax.f32 %v958, %v1052
        %v1087 = vmax.f32 %v959, %v1055
        %v1088 = vsub.f32 %v928, %v1056
        %v1089 = vsub.f32 %v929, %v1057
        %v1090 = vsub.f32 %v930, %v1058
        %v1091 = vsub.f32 %v931, %v1059
        %v1092 = vsub.f32 %v932, %v1060
        %v1093 = vsub.f32 %v933, %v1061
        %v1094 = vsub.f32 %v934, %v1062
        %v1095 = vsub.f32 %v935, %v1063
        %v1096 = vsub.f32 %v936, %v1064
        %v1097 = vsub.f32 %v937, %v1065
        %v1098 = vsub.f32 %v938, %v1066
        %v1099 = vsub.f32 %v939, %v1067
        %v1100 = vsub.f32 %v940, %v1068
        %v1101 = vsub.f32 %v941, %v1069
        %v1102 = vsub.f32 %v942, %v1070
        %v1103 = vsub.f32 %v943, %v1071
        %v1104 = vsub.f32 %v944, %v1072
        %v1105 = vsub.f32 %v945, %v1073
        %v1106 = vsub.f32 %v946, %v1074
        %v1107 = vsub.f32 %v947, %v1075
        %v1108 = vsub.f32 %v948, %v1076
        %v1109 = vsub.f32 %v949, %v1077
        %v1110 = vsub.f32 %v950, %v1078
        %v1111 = vsub.f32 %v951, %v1079
        %v1112 = vsub.f32 %v952, %v1080
        %v1113 = vsub.f32 %v953, %v1081
        %v1114 = vsub.f32 %v954, %v1082
        %v1115 = vsub.f32 %v955, %v1083
        %v1116 = vsub.f32 %v956, %v1084
        %v1117 = vsub.f32 %v957, %v1085
        %v1118 = vsub.f32 %v958, %v1086
        %v1119 = vsub.f32 %v959, %v1087
        %v1120 = vmul.f32 %v1088, 1.442695
        %v1121 = vpow.pop %v1120
        %v1122 = vmul.f32 %v1089, 1.442695
        %v1123 = vpow.pop %v1122
        %v1124 = vmul.f32 %v1090, 1.442695
        %v1125 = vpow.pop %v1124
        %v1126 = vmul.f32 %v1091, 1.442695
        %v1127 = vpow.pop %v1126
        %v1128 = vmul.f32 %v1092, 1.442695
        %v1129 = vpow.pop %v1128
        %v1130 = vmul.f32 %v1093, 1.442695
        %v1131 = vpow.pop %v1130
        %v1132 = vmul.f32 %v1094, 1.442695
        %v1133 = vpow.pop %v1132
        %v1134 = vmul.f32 %v1095, 1.442695
        %v1135 = vpow.pop %v1134
        %v1136 = vmul.f32 %v1096, 1.442695
        %v1137 = vpow.pop %v1136
        %v1138 = vmul.f32 %v1097, 1.442695
        %v1139 = vpow.pop %v1138
        %v1140 = vmul.f32 %v1098, 1.442695
        %v1141 = vpow.pop %v1140
        %v1142 = vmul.f32 %v1099, 1.442695
        %v1143 = vpow.pop %v1142
        %v1144 = vmul.f32 %v1100, 1.442695
        %v1145 = vpow.pop %v1144
        %v1146 = vmul.f32 %v1101, 1.442695
        %v1147 = vpow.pop %v1146
        %v1148 = vmul.f32 %v1102, 1.442695
        %v1149 = vpow.pop %v1148
        %v1150 = vmul.f32 %v1103, 1.442695
        %v1151 = vpow.pop %v1150
        %v1152 = vmul.f32 %v1104, 1.442695
        %v1153 = vpow.pop %v1152
        %v1154 = vmul.f32 %v1105, 1.442695
        %v1155 = vpow.pop %v1154
        %v1156 = vmul.f32 %v1106, 1.442695
        %v1157 = vpow.pop %v1156
        %v1158 = vmul.f32 %v1107, 1.442695
        %v1159 = vpow.pop %v1158
        %v1160 = vmul.f32 %v1108, 1.442695
        %v1161 = vpow.pop %v1160
        %v1162 = vmul.f32 %v1109, 1.442695
        %v1163 = vpow.pop %v1162
        %v1164 = vmul.f32 %v1110, 1.442695
        %v1165 = vpow.pop %v1164
        %v1166 = vmul.f32 %v1111, 1.442695
        %v1167 = vpow.pop %v1166
        %v1168 = vmul.f32 %v1112, 1.442695
        %v1169 = vpow.pop %v1168
        %v1170 = vmul.f32 %v1113, 1.442695
        %v1171 = vpow.pop %v1170
        %v1172 = vmul.f32 %v1114, 1.442695
        %v1173 = vpow.pop %v1172
        %v1174 = vmul.f32 %v1115, 1.442695
        %v1175 = vpow.pop %v1174
        %v1176 = vmul.f32 %v1116, 1.442695
        %v1177 = vpow.pop %v1176
        %v1178 = vmul.f32 %v1117, 1.442695
        %v1179 = vpow.pop %v1178
        %v1180 = vmul.f32 %v1118, 1.442695
        %v1181 = vpow.pop %v1180
        %v1182 = vmul.f32 %v1119, 1.442695
        %v1183 = vpow.pop %v1182
        %1185 = vset.pattern.permute.xlu0 0
        %1186 = vperm.xlu0 %1185, %v1056
        %v1187 = vpop.permute.xlu0 %1186
        %1190 = vset.pattern.permute.xlu0 0
        %1191 = vperm.xlu0 %1190, %v1057
        %v1192 = vpop.permute.xlu0 %1191
        %1195 = vset.pattern.permute.xlu0 0
        %1196 = vperm.xlu0 %1195, %v1058
        %v1197 = vpop.permute.xlu0 %1196
        %1200 = vset.pattern.permute.xlu0 0
        %1201 = vperm.xlu0 %1200, %v1059
        %v1202 = vpop.permute.xlu0 %1201
        %1205 = vset.pattern.permute.xlu0 0
        %1206 = vperm.xlu0 %1205, %v1060
        %v1207 = vpop.permute.xlu0 %1206
        %1210 = vset.pattern.permute.xlu0 0
        %1211 = vperm.xlu0 %1210, %v1061
        %v1212 = vpop.permute.xlu0 %1211
        %1215 = vset.pattern.permute.xlu0 0
        %1216 = vperm.xlu0 %1215, %v1062
        %v1217 = vpop.permute.xlu0 %1216
        %1220 = vset.pattern.permute.xlu0 0
        %1221 = vperm.xlu0 %1220, %v1063
        %v1222 = vpop.permute.xlu0 %1221
        %1225 = vset.pattern.permute.xlu0 0
        %1226 = vperm.xlu0 %1225, %v1064
        %v1227 = vpop.permute.xlu0 %1226
        %1230 = vset.pattern.permute.xlu0 0
        %1231 = vperm.xlu0 %1230, %v1065
        %v1232 = vpop.permute.xlu0 %1231
        %1235 = vset.pattern.permute.xlu0 0
        %1236 = vperm.xlu0 %1235, %v1066
        %v1237 = vpop.permute.xlu0 %1236
        %1240 = vset.pattern.permute.xlu0 0
        %1241 = vperm.xlu0 %1240, %v1067
        %v1242 = vpop.permute.xlu0 %1241
        %1245 = vset.pattern.permute.xlu0 0
        %1246 = vperm.xlu0 %1245, %v1068
        %v1247 = vpop.permute.xlu0 %1246
        %1250 = vset.pattern.permute.xlu0 0
        %1251 = vperm.xlu0 %1250, %v1069
        %v1252 = vpop.permute.xlu0 %1251
        %1255 = vset.pattern.permute.xlu0 0
        %1256 = vperm.xlu0 %1255, %v1070
        %v1257 = vpop.permute.xlu0 %1256
        %1260 = vset.pattern.permute.xlu0 0
        %1261 = vperm.xlu0 %1260, %v1071
        %v1262 = vpop.permute.xlu0 %1261
        %1265 = vset.pattern.permute.xlu0 0
        %1266 = vperm.xlu0 %1265, %v1072
        %v1267 = vpop.permute.xlu0 %1266
        %1270 = vset.pattern.permute.xlu0 0
        %1271 = vperm.xlu0 %1270, %v1073
        %v1272 = vpop.permute.xlu0 %1271
        %1275 = vset.pattern.permute.xlu0 0
        %1276 = vperm.xlu0 %1275, %v1074
        %v1277 = vpop.permute.xlu0 %1276
        %1280 = vset.pattern.permute.xlu0 0
        %1281 = vperm.xlu0 %1280, %v1075
        %v1282 = vpop.permute.xlu0 %1281
        %1285 = vset.pattern.permute.xlu0 0
        %1286 = vperm.xlu0 %1285, %v1076
        %v1287 = vpop.permute.xlu0 %1286
        %1290 = vset.pattern.permute.xlu0 0
        %1291 = vperm.xlu0 %1290, %v1077
        %v1292 = vpop.permute.xlu0 %1291
        %1295 = vset.pattern.permute.xlu0 0
        %1296 = vperm.xlu0 %1295, %v1078
        %v1297 = vpop.permute.xlu0 %1296
        %1300 = vset.pattern.permute.xlu0 0
        %1301 = vperm.xlu0 %1300, %v1079
        %v1302 = vpop.permute.xlu0 %1301
        %1305 = vset.pattern.permute.xlu0 0
        %1306 = vperm.xlu0 %1305, %v1080
        %v1307 = vpop.permute.xlu0 %1306
        %1310 = vset.pattern.permute.xlu0 0
        %1311 = vperm.xlu0 %1310, %v1081
        %v1312 = vpop.permute.xlu0 %1311
        %1315 = vset.pattern.permute.xlu0 0
        %1316 = vperm.xlu0 %1315, %v1082
        %v1317 = vpop.permute.xlu0 %1316
        %1320 = vset.pattern.permute.xlu0 0
        %1321 = vperm.xlu0 %1320, %v1083
        %v1322 = vpop.permute.xlu0 %1321
        %1325 = vset.pattern.permute.xlu0 0
        %1326 = vperm.xlu0 %1325, %v1084
        %v1327 = vpop.permute.xlu0 %1326
        %1330 = vset.pattern.permute.xlu0 0
        %1331 = vperm.xlu0 %1330, %v1085
        %v1332 = vpop.permute.xlu0 %1331
        %1335 = vset.pattern.permute.xlu0 0
        %1336 = vperm.xlu0 %1335, %v1086
        %v1337 = vpop.permute.xlu0 %1336
        %1340 = vset.pattern.permute.xlu0 0
        %1341 = vperm.xlu0 %1340, %v1087
        %v1342 = vpop.permute.xlu0 %1341
        %v1344 = vsub.f32 %v770, %v1187
        %v1345 = vsub.f32 %v772, %v1187
        %v1346 = vsub.f32 %v774, %v1192
        %v1347 = vsub.f32 %v776, %v1192
        %v1348 = vsub.f32 %v780, %v1197
        %v1349 = vsub.f32 %v782, %v1197
        %v1350 = vsub.f32 %v784, %v1202
        %v1351 = vsub.f32 %v786, %v1202
        %v1352 = vsub.f32 %v790, %v1207
        %v1353 = vsub.f32 %v792, %v1207
        %v1354 = vsub.f32 %v794, %v1212
        %v1355 = vsub.f32 %v796, %v1212
        %v1356 = vsub.f32 %v800, %v1217
        %v1357 = vsub.f32 %v802, %v1217
        %v1358 = vsub.f32 %v804, %v1222
        %v1359 = vsub.f32 %v806, %v1222
        %v1360 = vsub.f32 %v810, %v1227
        %v1361 = vsub.f32 %v812, %v1227
        %v1362 = vsub.f32 %v814, %v1232
        %v1363 = vsub.f32 %v816, %v1232
        %v1364 = vsub.f32 %v820, %v1237
        %v1365 = vsub.f32 %v822, %v1237
        %v1366 = vsub.f32 %v824, %v1242
        %v1367 = vsub.f32 %v826, %v1242
        %v1368 = vsub.f32 %v830, %v1247
        %v1369 = vsub.f32 %v832, %v1247
        %v1370 = vsub.f32 %v834, %v1252
        %v1371 = vsub.f32 %v836, %v1252
        %v1372 = vsub.f32 %v840, %v1257
        %v1373 = vsub.f32 %v842, %v1257
        %v1374 = vsub.f32 %v844, %v1262
        %v1375 = vsub.f32 %v846, %v1262
        %v1376 = vsub.f32 %v850, %v1267
        %v1377 = vsub.f32 %v852, %v1267
        %v1378 = vsub.f32 %v854, %v1272
        %v1379 = vsub.f32 %v856, %v1272
        %v1380 = vsub.f32 %v860, %v1277
        %v1381 = vsub.f32 %v862, %v1277
        %v1382 = vsub.f32 %v864, %v1282
        %v1383 = vsub.f32 %v866, %v1282
        %v1384 = vsub.f32 %v870, %v1287
        %v1385 = vsub.f32 %v872, %v1287
        %v1386 = vsub.f32 %v874, %v1292
        %v1387 = vsub.f32 %v876, %v1292
        %v1388 = vsub.f32 %v880, %v1297
        %v1389 = vsub.f32 %v882, %v1297
        %v1390 = vsub.f32 %v884, %v1302
        %v1391 = vsub.f32 %v886, %v1302
        %v1392 = vsub.f32 %v890, %v1307
        %v1393 = vsub.f32 %v892, %v1307
        %v1394 = vsub.f32 %v894, %v1312
        %v1395 = vsub.f32 %v896, %v1312
        %v1396 = vsub.f32 %v900, %v1317
        %v1397 = vsub.f32 %v902, %v1317
        %v1398 = vsub.f32 %v904, %v1322
        %v1399 = vsub.f32 %v906, %v1322
        %v1400 = vsub.f32 %v910, %v1327
        %v1401 = vsub.f32 %v912, %v1327
        %v1402 = vsub.f32 %v914, %v1332
        %v1403 = vsub.f32 %v916, %v1332
        %v1404 = vsub.f32 %v920, %v1337
        %v1405 = vsub.f32 %v922, %v1337
        %v1406 = vsub.f32 %v924, %v1342
        %v1407 = vsub.f32 %v926, %v1342
        %v1408 = vmul.f32 %v1344, 1.442695
        %v1409 = vpow.pop %v1408
        %v1410 = vmul.f32 %v1345, 1.442695
        %v1411 = vpow.pop %v1410
        %v1412 = vmul.f32 %v1346, 1.442695
        %v1413 = vpow.pop %v1412
        %v1414 = vmul.f32 %v1347, 1.442695
        %v1415 = vpow.pop %v1414
        %v1416 = vmul.f32 %v1348, 1.442695
        %v1417 = vpow.pop %v1416
        %v1418 = vmul.f32 %v1349, 1.442695
        %v1419 = vpow.pop %v1418
        %v1420 = vmul.f32 %v1350, 1.442695
        %v1421 = vpow.pop %v1420
        %v1422 = vmul.f32 %v1351, 1.442695
        %v1423 = vpow.pop %v1422
        %v1424 = vmul.f32 %v1352, 1.442695
        %v1425 = vpow.pop %v1424
        %v1426 = vmul.f32 %v1353, 1.442695
        %v1427 = vpow.pop %v1426
        %v1428 = vmul.f32 %v1354, 1.442695
        %v1429 = vpow.pop %v1428
        %v1430 = vmul.f32 %v1355, 1.442695
        %v1431 = vpow.pop %v1430
        %v1432 = vmul.f32 %v1356, 1.442695
        %v1433 = vpow.pop %v1432
        %v1434 = vmul.f32 %v1357, 1.442695
        %v1435 = vpow.pop %v1434
        %v1436 = vmul.f32 %v1358, 1.442695
        %v1437 = vpow.pop %v1436
        %v1438 = vmul.f32 %v1359, 1.442695
        %v1439 = vpow.pop %v1438
        %v1440 = vmul.f32 %v1360, 1.442695
        %v1441 = vpow.pop %v1440
        %v1442 = vmul.f32 %v1361, 1.442695
        %v1443 = vpow.pop %v1442
        %v1444 = vmul.f32 %v1362, 1.442695
        %v1445 = vpow.pop %v1444
        %v1446 = vmul.f32 %v1363, 1.442695
        %v1447 = vpow.pop %v1446
        %v1448 = vmul.f32 %v1364, 1.442695
        %v1449 = vpow.pop %v1448
        %v1450 = vmul.f32 %v1365, 1.442695
        %v1451 = vpow.pop %v1450
        %v1452 = vmul.f32 %v1366, 1.442695
        %v1453 = vpow.pop %v1452
        %v1454 = vmul.f32 %v1367, 1.442695
        %v1455 = vpow.pop %v1454
        %v1456 = vmul.f32 %v1368, 1.442695
        %v1457 = vpow.pop %v1456
        %v1458 = vmul.f32 %v1369, 1.442695
        %v1459 = vpow.pop %v1458
        %v1460 = vmul.f32 %v1370, 1.442695
        %v1461 = vpow.pop %v1460
        %v1462 = vmul.f32 %v1371, 1.442695
        %v1463 = vpow.pop %v1462
        %v1464 = vmul.f32 %v1372, 1.442695
        %v1465 = vpow.pop %v1464
        %v1466 = vmul.f32 %v1373, 1.442695
        %v1467 = vpow.pop %v1466
        %v1468 = vmul.f32 %v1374, 1.442695
        %v1469 = vpow.pop %v1468
        %v1470 = vmul.f32 %v1375, 1.442695
        %v1471 = vpow.pop %v1470
        %v1472 = vmul.f32 %v1376, 1.442695
        %v1473 = vpow.pop %v1472
        %v1474 = vmul.f32 %v1377, 1.442695
        %v1475 = vpow.pop %v1474
        %v1476 = vmul.f32 %v1378, 1.442695
        %v1477 = vpow.pop %v1476
        %v1478 = vmul.f32 %v1379, 1.442695
        %v1479 = vpow.pop %v1478
        %v1480 = vmul.f32 %v1380, 1.442695
        %v1481 = vpow.pop %v1480
        %v1482 = vmul.f32 %v1381, 1.442695
        %v1483 = vpow.pop %v1482
        %v1484 = vmul.f32 %v1382, 1.442695
        %v1485 = vpow.pop %v1484
        %v1486 = vmul.f32 %v1383, 1.442695
        %v1487 = vpow.pop %v1486
        %v1488 = vmul.f32 %v1384, 1.442695
        %v1489 = vpow.pop %v1488
        %v1490 = vmul.f32 %v1385, 1.442695
        %v1491 = vpow.pop %v1490
        %v1492 = vmul.f32 %v1386, 1.442695
        %v1493 = vpow.pop %v1492
        %v1494 = vmul.f32 %v1387, 1.442695
        %v1495 = vpow.pop %v1494
        %v1496 = vmul.f32 %v1388, 1.442695
        %v1497 = vpow.pop %v1496
        %v1498 = vmul.f32 %v1389, 1.442695
        %v1499 = vpow.pop %v1498
        %v1500 = vmul.f32 %v1390, 1.442695
        %v1501 = vpow.pop %v1500
        %v1502 = vmul.f32 %v1391, 1.442695
        %v1503 = vpow.pop %v1502
        %v1504 = vmul.f32 %v1392, 1.442695
        %v1505 = vpow.pop %v1504
        %v1506 = vmul.f32 %v1393, 1.442695
        %v1507 = vpow.pop %v1506
        %v1508 = vmul.f32 %v1394, 1.442695
        %v1509 = vpow.pop %v1508
        %v1510 = vmul.f32 %v1395, 1.442695
        %v1511 = vpow.pop %v1510
        %v1512 = vmul.f32 %v1396, 1.442695
        %v1513 = vpow.pop %v1512
        %v1514 = vmul.f32 %v1397, 1.442695
        %v1515 = vpow.pop %v1514
        %v1516 = vmul.f32 %v1398, 1.442695
        %v1517 = vpow.pop %v1516
        %v1518 = vmul.f32 %v1399, 1.442695
        %v1519 = vpow.pop %v1518
        %v1520 = vmul.f32 %v1400, 1.442695
        %v1521 = vpow.pop %v1520
        %v1522 = vmul.f32 %v1401, 1.442695
        %v1523 = vpow.pop %v1522
        %v1524 = vmul.f32 %v1402, 1.442695
        %v1525 = vpow.pop %v1524
        %v1526 = vmul.f32 %v1403, 1.442695
        %v1527 = vpow.pop %v1526
        %v1528 = vmul.f32 %v1404, 1.442695
        %v1529 = vpow.pop %v1528
        %v1530 = vmul.f32 %v1405, 1.442695
        %v1531 = vpow.pop %v1530
        %v1532 = vmul.f32 %v1406, 1.442695
        %v1533 = vpow.pop %v1532
        %v1534 = vmul.f32 %v1407, 1.442695
        %v1535 = vpow.pop %v1534
        %vm1536 = vcmask 7168
        %1537 = vst.msk [vmem:[#allocation2] sm:$0xff] %vm1536, %v1056
        %1538 = vst.msk [vmem:[#allocation2 + $0x8] sm:$0xff] %vm1536, %v1057
        %1539 = vst.msk [vmem:[#allocation2 + $0x10] sm:$0xff] %vm1536, %v1058
        %1540 = vst.msk [vmem:[#allocation2 + $0x18] sm:$0xff] %vm1536, %v1059
        %1541 = vst.msk [vmem:[#allocation2 + $0x20] sm:$0xff] %vm1536, %v1060
        %1542 = vst.msk [vmem:[#allocation2 + $0x28] sm:$0xff] %vm1536, %v1061
        %1543 = vst.msk [vmem:[#allocation2 + $0x30] sm:$0xff] %vm1536, %v1062
        %1544 = vst.msk [vmem:[#allocation2 + $0x38] sm:$0xff] %vm1536, %v1063
        %1545 = vst.msk [vmem:[#allocation2 + $0x40] sm:$0xff] %vm1536, %v1064
        %1546 = vst.msk [vmem:[#allocation2 + $0x48] sm:$0xff] %vm1536, %v1065
        %1547 = vst.msk [vmem:[#allocation2 + $0x50] sm:$0xff] %vm1536, %v1066
        %1548 = vst.msk [vmem:[#allocation2 + $0x58] sm:$0xff] %vm1536, %v1067
        %1549 = vst.msk [vmem:[#allocation2 + $0x60] sm:$0xff] %vm1536, %v1068
        %1550 = vst.msk [vmem:[#allocation2 + $0x68] sm:$0xff] %vm1536, %v1069
        %1551 = vst.msk [vmem:[#allocation2 + $0x70] sm:$0xff] %vm1536, %v1070
        %1552 = vst.msk [vmem:[#allocation2 + $0x78] sm:$0xff] %vm1536, %v1071
        %1553 = vst.msk [vmem:[#allocation2 + $0x80] sm:$0xff] %vm1536, %v1072
        %1554 = vst.msk [vmem:[#allocation2 + $0x88] sm:$0xff] %vm1536, %v1073
        %1555 = vst.msk [vmem:[#allocation2 + $0x90] sm:$0xff] %vm1536, %v1074
        %1556 = vst.msk [vmem:[#allocation2 + $0x98] sm:$0xff] %vm1536, %v1075
        %1557 = vst.msk [vmem:[#allocation2 + $0xa0] sm:$0xff] %vm1536, %v1076
        %1558 = vst.msk [vmem:[#allocation2 + $0xa8] sm:$0xff] %vm1536, %v1077
        %1559 = vst.msk [vmem:[#allocation2 + $0xb0] sm:$0xff] %vm1536, %v1078
        %1560 = vst.msk [vmem:[#allocation2 + $0xb8] sm:$0xff] %vm1536, %v1079
        %1561 = vst.msk [vmem:[#allocation2 + $0xc0] sm:$0xff] %vm1536, %v1080
        %1562 = vst.msk [vmem:[#allocation2 + $0xc8] sm:$0xff] %vm1536, %v1081
        %1563 = vst.msk [vmem:[#allocation2 + $0xd0] sm:$0xff] %vm1536, %v1082
        %1564 = vst.msk [vmem:[#allocation2 + $0xd8] sm:$0xff] %vm1536, %v1083
        %1565 = vst.msk [vmem:[#allocation2 + $0xe0] sm:$0xff] %vm1536, %v1084
        %1566 = vst.msk [vmem:[#allocation2 + $0xe8] sm:$0xff] %vm1536, %v1085
        %1567 = vst.msk [vmem:[#allocation2 + $0xf0] sm:$0xff] %vm1536, %v1086
        %1568 = vst.msk [vmem:[#allocation2 + $0xf8] sm:$0xff] %vm1536, %v1087
        %v1569 = vld [vmem:[#allocation3] sm:$0xff]
        %v1570 = vld [vmem:[#allocation3 + $0x8] sm:$0xff]
        %v1571 = vld [vmem:[#allocation3 + $0x10] sm:$0xff]
        %v1572 = vld [vmem:[#allocation3 + $0x18] sm:$0xff]
        %v1573 = vld [vmem:[#allocation3 + $0x20] sm:$0xff]
        %v1574 = vld [vmem:[#allocation3 + $0x28] sm:$0xff]
        %v1575 = vld [vmem:[#allocation3 + $0x30] sm:$0xff]
        %v1576 = vld [vmem:[#allocation3 + $0x38] sm:$0xff]
        %v1577 = vld [vmem:[#allocation3 + $0x40] sm:$0xff]
        %v1578 = vld [vmem:[#allocation3 + $0x48] sm:$0xff]
        %v1579 = vld [vmem:[#allocation3 + $0x50] sm:$0xff]
        %v1580 = vld [vmem:[#allocation3 + $0x58] sm:$0xff]
        %v1581 = vld [vmem:[#allocation3 + $0x60] sm:$0xff]
        %v1582 = vld [vmem:[#allocation3 + $0x68] sm:$0xff]
        %v1583 = vld [vmem:[#allocation3 + $0x70] sm:$0xff]
        %v1584 = vld [vmem:[#allocation3 + $0x78] sm:$0xff]
        %v1585 = vld [vmem:[#allocation3 + $0x80] sm:$0xff]
        %v1586 = vld [vmem:[#allocation3 + $0x88] sm:$0xff]
        %v1587 = vld [vmem:[#allocation3 + $0x90] sm:$0xff]
        %v1588 = vld [vmem:[#allocation3 + $0x98] sm:$0xff]
        %v1589 = vld [vmem:[#allocation3 + $0xa0] sm:$0xff]
        %v1590 = vld [vmem:[#allocation3 + $0xa8] sm:$0xff]
        %v1591 = vld [vmem:[#allocation3 + $0xb0] sm:$0xff]
        %v1592 = vld [vmem:[#allocation3 + $0xb8] sm:$0xff]
        %v1593 = vld [vmem:[#allocation3 + $0xc0] sm:$0xff]
        %v1594 = vld [vmem:[#allocation3 + $0xc8] sm:$0xff]
        %v1595 = vld [vmem:[#allocation3 + $0xd0] sm:$0xff]
        %v1596 = vld [vmem:[#allocation3 + $0xd8] sm:$0xff]
        %v1597 = vld [vmem:[#allocation3 + $0xe0] sm:$0xff]
        %v1598 = vld [vmem:[#allocation3 + $0xe8] sm:$0xff]
        %v1599 = vld [vmem:[#allocation3 + $0xf0] sm:$0xff]
        %v1600 = vld [vmem:[#allocation3 + $0xf8] sm:$0xff]
        %v1601 = vmul.f32 %v1121, %v1569
        %v1602 = vmul.f32 %v1123, %v1570
        %v1603 = vmul.f32 %v1125, %v1571
        %v1604 = vmul.f32 %v1127, %v1572
        %v1605 = vmul.f32 %v1129, %v1573
        %v1606 = vmul.f32 %v1131, %v1574
        %v1607 = vmul.f32 %v1133, %v1575
        %v1608 = vmul.f32 %v1135, %v1576
        %v1609 = vmul.f32 %v1137, %v1577
        %v1610 = vmul.f32 %v1139, %v1578
        %v1611 = vmul.f32 %v1141, %v1579
        %v1612 = vmul.f32 %v1143, %v1580
        %v1613 = vmul.f32 %v1145, %v1581
        %v1614 = vmul.f32 %v1147, %v1582
        %v1615 = vmul.f32 %v1149, %v1583
        %v1616 = vmul.f32 %v1151, %v1584
        %v1617 = vmul.f32 %v1153, %v1585
        %v1618 = vmul.f32 %v1155, %v1586
        %v1619 = vmul.f32 %v1157, %v1587
        %v1620 = vmul.f32 %v1159, %v1588
        %v1621 = vmul.f32 %v1161, %v1589
        %v1622 = vmul.f32 %v1163, %v1590
        %v1623 = vmul.f32 %v1165, %v1591
        %v1624 = vmul.f32 %v1167, %v1592
        %v1625 = vmul.f32 %v1169, %v1593
        %v1626 = vmul.f32 %v1171, %v1594
        %v1627 = vmul.f32 %v1173, %v1595
        %v1628 = vmul.f32 %v1175, %v1596
        %v1629 = vmul.f32 %v1177, %v1597
        %v1630 = vmul.f32 %v1179, %v1598
        %v1631 = vmul.f32 %v1181, %v1599
        %v1632 = vmul.f32 %v1183, %v1600
        %v1633 = vadd.f32 %v1409, %v1411
        %1634 = vadd.xlane.f32.xlu0 %v1633
        %v1635 = vpop.xlane.xlu0 %1634
        %v1636 = vadd.f32 %v1413, %v1415
        %1637 = vadd.xlane.f32.xlu0 %v1636
        %v1638 = vpop.xlane.xlu0 %1637
        %v1639 = vadd.f32 %v1417, %v1419
        %1640 = vadd.xlane.f32.xlu0 %v1639
        %v1641 = vpop.xlane.xlu0 %1640
        %v1642 = vadd.f32 %v1421, %v1423
        %1643 = vadd.xlane.f32.xlu0 %v1642
        %v1644 = vpop.xlane.xlu0 %1643
        %v1645 = vadd.f32 %v1425, %v1427
        %1646 = vadd.xlane.f32.xlu0 %v1645
        %v1647 = vpop.xlane.xlu0 %1646
        %v1648 = vadd.f32 %v1429, %v1431
        %1649 = vadd.xlane.f32.xlu0 %v1648
        %v1650 = vpop.xlane.xlu0 %1649
        %v1651 = vadd.f32 %v1433, %v1435
        %1652 = vadd.xlane.f32.xlu0 %v1651
        %v1653 = vpop.xlane.xlu0 %1652
        %v1654 = vadd.f32 %v1437, %v1439
        %1655 = vadd.xlane.f32.xlu0 %v1654
        %v1656 = vpop.xlane.xlu0 %1655
        %v1657 = vadd.f32 %v1441, %v1443
        %1658 = vadd.xlane.f32.xlu0 %v1657
        %v1659 = vpop.xlane.xlu0 %1658
        %v1660 = vadd.f32 %v1445, %v1447
        %1661 = vadd.xlane.f32.xlu0 %v1660
        %v1662 = vpop.xlane.xlu0 %1661
        %v1663 = vadd.f32 %v1449, %v1451
        %1664 = vadd.xlane.f32.xlu0 %v1663
        %v1665 = vpop.xlane.xlu0 %1664
        %v1666 = vadd.f32 %v1453, %v1455
        %1667 = vadd.xlane.f32.xlu0 %v1666
        %v1668 = vpop.xlane.xlu0 %1667
        %v1669 = vadd.f32 %v1457, %v1459
        %1670 = vadd.xlane.f32.xlu0 %v1669
        %v1671 = vpop.xlane.xlu0 %1670
        %v1672 = vadd.f32 %v1461, %v1463
        %1673 = vadd.xlane.f32.xlu0 %v1672
        %v1674 = vpop.xlane.xlu0 %1673
        %v1675 = vadd.f32 %v1465, %v1467
        %1676 = vadd.xlane.f32.xlu0 %v1675
        %v1677 = vpop.xlane.xlu0 %1676
        %v1678 = vadd.f32 %v1469, %v1471
        %1679 = vadd.xlane.f32.xlu0 %v1678
        %v1680 = vpop.xlane.xlu0 %1679
        %v1681 = vadd.f32 %v1473, %v1475
        %1682 = vadd.xlane.f32.xlu0 %v1681
        %v1683 = vpop.xlane.xlu0 %1682
        %v1684 = vadd.f32 %v1477, %v1479
        %1685 = vadd.xlane.f32.xlu0 %v1684
        %v1686 = vpop.xlane.xlu0 %1685
        %v1687 = vadd.f32 %v1481, %v1483
        %1688 = vadd.xlane.f32.xlu0 %v1687
        %v1689 = vpop.xlane.xlu0 %1688
        %v1690 = vadd.f32 %v1485, %v1487
        %1691 = vadd.xlane.f32.xlu0 %v1690
        %v1692 = vpop.xlane.xlu0 %1691
        %v1693 = vadd.f32 %v1489, %v1491
        %1694 = vadd.xlane.f32.xlu0 %v1693
        %v1695 = vpop.xlane.xlu0 %1694
        %v1696 = vadd.f32 %v1493, %v1495
        %1697 = vadd.xlane.f32.xlu0 %v1696
        %v1698 = vpop.xlane.xlu0 %1697
        %v1699 = vadd.f32 %v1497, %v1499
        %1700 = vadd.xlane.f32.xlu0 %v1699
        %v1701 = vpop.xlane.xlu0 %1700
        %v1702 = vadd.f32 %v1501, %v1503
        %1703 = vadd.xlane.f32.xlu0 %v1702
        %v1704 = vpop.xlane.xlu0 %1703
        %v1705 = vadd.f32 %v1505, %v1507
        %1706 = vadd.xlane.f32.xlu0 %v1705
        %v1707 = vpop.xlane.xlu0 %1706
        %v1708 = vadd.f32 %v1509, %v1511
        %1709 = vadd.xlane.f32.xlu0 %v1708
        %v1710 = vpop.xlane.xlu0 %1709
        %v1711 = vadd.f32 %v1513, %v1515
        %1712 = vadd.xlane.f32.xlu0 %v1711
        %v1713 = vpop.xlane.xlu0 %1712
        %v1714 = vadd.f32 %v1517, %v1519
        %1715 = vadd.xlane.f32.xlu0 %v1714
        %v1716 = vpop.xlane.xlu0 %1715
        %v1717 = vadd.f32 %v1521, %v1523
        %1718 = vadd.xlane.f32.xlu0 %v1717
        %v1719 = vpop.xlane.xlu0 %1718
        %v1720 = vadd.f32 %v1525, %v1527
        %1721 = vadd.xlane.f32.xlu0 %v1720
        %v1722 = vpop.xlane.xlu0 %1721
        %v1723 = vadd.f32 %v1529, %v1531
        %1724 = vadd.xlane.f32.xlu0 %v1723
        %v1725 = vpop.xlane.xlu0 %1724
        %v1726 = vadd.f32 %v1533, %v1535
        %1727 = vadd.xlane.f32.xlu0 %v1726
        %v1728 = vpop.xlane.xlu0 %1727
        %v1729 = vadd.f32 %v1601, %v1635
        %v1730 = vadd.f32 %v1602, %v1638
        %v1731 = vadd.f32 %v1603, %v1641
        %v1732 = vadd.f32 %v1604, %v1644
        %v1733 = vadd.f32 %v1605, %v1647
        %v1734 = vadd.f32 %v1606, %v1650
        %v1735 = vadd.f32 %v1607, %v1653
        %v1736 = vadd.f32 %v1608, %v1656
        %v1737 = vadd.f32 %v1609, %v1659
        %v1738 = vadd.f32 %v1610, %v1662
        %v1739 = vadd.f32 %v1611, %v1665
        %v1740 = vadd.f32 %v1612, %v1668
        %v1741 = vadd.f32 %v1613, %v1671
        %v1742 = vadd.f32 %v1614, %v1674
        %v1743 = vadd.f32 %v1615, %v1677
        %v1744 = vadd.f32 %v1616, %v1680
        %v1745 = vadd.f32 %v1617, %v1683
        %v1746 = vadd.f32 %v1618, %v1686
        %v1747 = vadd.f32 %v1619, %v1689
        %v1748 = vadd.f32 %v1620, %v1692
        %v1749 = vadd.f32 %v1621, %v1695
        %v1750 = vadd.f32 %v1622, %v1698
        %v1751 = vadd.f32 %v1623, %v1701
        %v1752 = vadd.f32 %v1624, %v1704
        %v1753 = vadd.f32 %v1625, %v1707
        %v1754 = vadd.f32 %v1626, %v1710
        %v1755 = vadd.f32 %v1627, %v1713
        %v1756 = vadd.f32 %v1628, %v1716
        %v1757 = vadd.f32 %v1629, %v1719
        %v1758 = vadd.f32 %v1630, %v1722
        %v1759 = vadd.f32 %v1631, %v1725
        %v1760 = vadd.f32 %v1632, %v1728
        %1761 = vst.msk [vmem:[#allocation3] sm:$0xff] %vm1536, %v1729
        %1762 = vst.msk [vmem:[#allocation3 + $0x8] sm:$0xff] %vm1536, %v1730
        %1763 = vst.msk [vmem:[#allocation3 + $0x10] sm:$0xff] %vm1536, %v1731
        %1764 = vst.msk [vmem:[#allocation3 + $0x18] sm:$0xff] %vm1536, %v1732
        %1765 = vst.msk [vmem:[#allocation3 + $0x20] sm:$0xff] %vm1536, %v1733
        %1766 = vst.msk [vmem:[#allocation3 + $0x28] sm:$0xff] %vm1536, %v1734
        %1767 = vst.msk [vmem:[#allocation3 + $0x30] sm:$0xff] %vm1536, %v1735
        %1768 = vst.msk [vmem:[#allocation3 + $0x38] sm:$0xff] %vm1536, %v1736
        %1769 = vst.msk [vmem:[#allocation3 + $0x40] sm:$0xff] %vm1536, %v1737
        %1770 = vst.msk [vmem:[#allocation3 + $0x48] sm:$0xff] %vm1536, %v1738
        %1771 = vst.msk [vmem:[#allocation3 + $0x50] sm:$0xff] %vm1536, %v1739
        %1772 = vst.msk [vmem:[#allocation3 + $0x58] sm:$0xff] %vm1536, %v1740
        %1773 = vst.msk [vmem:[#allocation3 + $0x60] sm:$0xff] %vm1536, %v1741
        %1774 = vst.msk [vmem:[#allocation3 + $0x68] sm:$0xff] %vm1536, %v1742
        %1775 = vst.msk [vmem:[#allocation3 + $0x70] sm:$0xff] %vm1536, %v1743
        %1776 = vst.msk [vmem:[#allocation3 + $0x78] sm:$0xff] %vm1536, %v1744
        %1777 = vst.msk [vmem:[#allocation3 + $0x80] sm:$0xff] %vm1536, %v1745
        %1778 = vst.msk [vmem:[#allocation3 + $0x88] sm:$0xff] %vm1536, %v1746
        %1779 = vst.msk [vmem:[#allocation3 + $0x90] sm:$0xff] %vm1536, %v1747
        %1780 = vst.msk [vmem:[#allocation3 + $0x98] sm:$0xff] %vm1536, %v1748
        %1781 = vst.msk [vmem:[#allocation3 + $0xa0] sm:$0xff] %vm1536, %v1749
        %1782 = vst.msk [vmem:[#allocation3 + $0xa8] sm:$0xff] %vm1536, %v1750
        %1783 = vst.msk [vmem:[#allocation3 + $0xb0] sm:$0xff] %vm1536, %v1751
        %1784 = vst.msk [vmem:[#allocation3 + $0xb8] sm:$0xff] %vm1536, %v1752
        %1785 = vst.msk [vmem:[#allocation3 + $0xc0] sm:$0xff] %vm1536, %v1753
        %1786 = vst.msk [vmem:[#allocation3 + $0xc8] sm:$0xff] %vm1536, %v1754
        %1787 = vst.msk [vmem:[#allocation3 + $0xd0] sm:$0xff] %vm1536, %v1755
        %1788 = vst.msk [vmem:[#allocation3 + $0xd8] sm:$0xff] %vm1536, %v1756
        %1789 = vst.msk [vmem:[#allocation3 + $0xe0] sm:$0xff] %vm1536, %v1757
        %1790 = vst.msk [vmem:[#allocation3 + $0xe8] sm:$0xff] %vm1536, %v1758
        %1791 = vst.msk [vmem:[#allocation3 + $0xf0] sm:$0xff] %vm1536, %v1759
        %1792 = vst.msk [vmem:[#allocation3 + $0xf8] sm:$0xff] %vm1536, %v1760
        %v1793 = vld [vmem:[#allocation4] sm:$0xff]
        %v1794 = vld [vmem:[#allocation4 + $0x8] sm:$0xff]
        %v1795 = vld [vmem:[#allocation4 + $0x10] sm:$0xff]
        %v1796 = vld [vmem:[#allocation4 + $0x18] sm:$0xff]
        %v1797 = vld [vmem:[#allocation4 + $0x20] sm:$0xff]
        %v1798 = vld [vmem:[#allocation4 + $0x28] sm:$0xff]
        %v1799 = vld [vmem:[#allocation4 + $0x30] sm:$0xff]
        %v1800 = vld [vmem:[#allocation4 + $0x38] sm:$0xff]
        %v1801 = vld [vmem:[#allocation4 + $0x40] sm:$0xff]
        %v1802 = vld [vmem:[#allocation4 + $0x48] sm:$0xff]
        %v1803 = vld [vmem:[#allocation4 + $0x50] sm:$0xff]
        %v1804 = vld [vmem:[#allocation4 + $0x58] sm:$0xff]
        %v1805 = vld [vmem:[#allocation4 + $0x60] sm:$0xff]
        %v1806 = vld [vmem:[#allocation4 + $0x68] sm:$0xff]
        %v1807 = vld [vmem:[#allocation4 + $0x70] sm:$0xff]
        %v1808 = vld [vmem:[#allocation4 + $0x78] sm:$0xff]
        %v1809 = vld [vmem:[#allocation4 + $0x80] sm:$0xff]
        %v1810 = vld [vmem:[#allocation4 + $0x88] sm:$0xff]
        %v1811 = vld [vmem:[#allocation4 + $0x90] sm:$0xff]
        %v1812 = vld [vmem:[#allocation4 + $0x98] sm:$0xff]
        %v1813 = vld [vmem:[#allocation4 + $0xa0] sm:$0xff]
        %v1814 = vld [vmem:[#allocation4 + $0xa8] sm:$0xff]
        %v1815 = vld [vmem:[#allocation4 + $0xb0] sm:$0xff]
        %v1816 = vld [vmem:[#allocation4 + $0xb8] sm:$0xff]
        %v1817 = vld [vmem:[#allocation4 + $0xc0] sm:$0xff]
        %v1818 = vld [vmem:[#allocation4 + $0xc8] sm:$0xff]
        %v1819 = vld [vmem:[#allocation4 + $0xd0] sm:$0xff]
        %v1820 = vld [vmem:[#allocation4 + $0xd8] sm:$0xff]
        %v1821 = vld [vmem:[#allocation4 + $0xe0] sm:$0xff]
        %v1822 = vld [vmem:[#allocation4 + $0xe8] sm:$0xff]
        %v1823 = vld [vmem:[#allocation4 + $0xf0] sm:$0xff]
        %v1824 = vld [vmem:[#allocation4 + $0xf8] sm:$0xff]
        %1826 = vset.pattern.permute.xlu0 0
        %1827 = vperm.xlu0 %1826, %v1121
        %v1828 = vpop.permute.xlu0 %1827
        %1831 = vset.pattern.permute.xlu0 0
        %1832 = vperm.xlu0 %1831, %v1123
        %v1833 = vpop.permute.xlu0 %1832
        %1836 = vset.pattern.permute.xlu0 0
        %1837 = vperm.xlu0 %1836, %v1125
        %v1838 = vpop.permute.xlu0 %1837
        %1841 = vset.pattern.permute.xlu0 0
        %1842 = vperm.xlu0 %1841, %v1127
        %v1843 = vpop.permute.xlu0 %1842
        %1846 = vset.pattern.permute.xlu0 0
        %1847 = vperm.xlu0 %1846, %v1129
        %v1848 = vpop.permute.xlu0 %1847
        %1851 = vset.pattern.permute.xlu0 0
        %1852 = vperm.xlu0 %1851, %v1131
        %v1853 = vpop.permute.xlu0 %1852
        %1856 = vset.pattern.permute.xlu0 0
        %1857 = vperm.xlu0 %1856, %v1133
        %v1858 = vpop.permute.xlu0 %1857
        %1861 = vset.pattern.permute.xlu0 0
        %1862 = vperm.xlu0 %1861, %v1135
        %v1863 = vpop.permute.xlu0 %1862
        %1866 = vset.pattern.permute.xlu0 0
        %1867 = vperm.xlu0 %1866, %v1137
        %v1868 = vpop.permute.xlu0 %1867
        %1871 = vset.pattern.permute.xlu0 0
        %1872 = vperm.xlu0 %1871, %v1139
        %v1873 = vpop.permute.xlu0 %1872
        %1876 = vset.pattern.permute.xlu0 0
        %1877 = vperm.xlu0 %1876, %v1141
        %v1878 = vpop.permute.xlu0 %1877
        %1881 = vset.pattern.permute.xlu0 0
        %1882 = vperm.xlu0 %1881, %v1143
        %v1883 = vpop.permute.xlu0 %1882
        %1886 = vset.pattern.permute.xlu0 0
        %1887 = vperm.xlu0 %1886, %v1145
        %v1888 = vpop.permute.xlu0 %1887
        %1891 = vset.pattern.permute.xlu0 0
        %1892 = vperm.xlu0 %1891, %v1147
        %v1893 = vpop.permute.xlu0 %1892
        %1896 = vset.pattern.permute.xlu0 0
        %1897 = vperm.xlu0 %1896, %v1149
        %v1898 = vpop.permute.xlu0 %1897
        %1901 = vset.pattern.permute.xlu0 0
        %1902 = vperm.xlu0 %1901, %v1151
        %v1903 = vpop.permute.xlu0 %1902
        %1906 = vset.pattern.permute.xlu0 0
        %1907 = vperm.xlu0 %1906, %v1153
        %v1908 = vpop.permute.xlu0 %1907
        %1911 = vset.pattern.permute.xlu0 0
        %1912 = vperm.xlu0 %1911, %v1155
        %v1913 = vpop.permute.xlu0 %1912
        %1916 = vset.pattern.permute.xlu0 0
        %1917 = vperm.xlu0 %1916, %v1157
        %v1918 = vpop.permute.xlu0 %1917
        %1921 = vset.pattern.permute.xlu0 0
        %1922 = vperm.xlu0 %1921, %v1159
        %v1923 = vpop.permute.xlu0 %1922
        %1926 = vset.pattern.permute.xlu0 0
        %1927 = vperm.xlu0 %1926, %v1161
        %v1928 = vpop.permute.xlu0 %1927
        %1931 = vset.pattern.permute.xlu0 0
        %1932 = vperm.xlu0 %1931, %v1163
        %v1933 = vpop.permute.xlu0 %1932
        %1936 = vset.pattern.permute.xlu0 0
        %1937 = vperm.xlu0 %1936, %v1165
        %v1938 = vpop.permute.xlu0 %1937
        %1941 = vset.pattern.permute.xlu0 0
        %1942 = vperm.xlu0 %1941, %v1167
        %v1943 = vpop.permute.xlu0 %1942
        %1946 = vset.pattern.permute.xlu0 0
        %1947 = vperm.xlu0 %1946, %v1169
        %v1948 = vpop.permute.xlu0 %1947
        %1951 = vset.pattern.permute.xlu0 0
        %1952 = vperm.xlu0 %1951, %v1171
        %v1953 = vpop.permute.xlu0 %1952
        %1956 = vset.pattern.permute.xlu0 0
        %1957 = vperm.xlu0 %1956, %v1173
        %v1958 = vpop.permute.xlu0 %1957
        %1961 = vset.pattern.permute.xlu0 0
        %1962 = vperm.xlu0 %1961, %v1175
        %v1963 = vpop.permute.xlu0 %1962
        %1966 = vset.pattern.permute.xlu0 0
        %1967 = vperm.xlu0 %1966, %v1177
        %v1968 = vpop.permute.xlu0 %1967
        %1971 = vset.pattern.permute.xlu0 0
        %1972 = vperm.xlu0 %1971, %v1179
        %v1973 = vpop.permute.xlu0 %1972
        %1976 = vset.pattern.permute.xlu0 0
        %1977 = vperm.xlu0 %1976, %v1181
        %v1978 = vpop.permute.xlu0 %1977
        %1981 = vset.pattern.permute.xlu0 0
        %1982 = vperm.xlu0 %1981, %v1183
        %v1983 = vpop.permute.xlu0 %1982
        %v1985 = vmul.f32 %v1828, %v1793
        %v1986 = vmul.f32 %v1833, %v1794
        %v1987 = vmul.f32 %v1838, %v1795
        %v1988 = vmul.f32 %v1843, %v1796
        %v1989 = vmul.f32 %v1848, %v1797
        %v1990 = vmul.f32 %v1853, %v1798
        %v1991 = vmul.f32 %v1858, %v1799
        %v1992 = vmul.f32 %v1863, %v1800
        %v1993 = vmul.f32 %v1868, %v1801
        %v1994 = vmul.f32 %v1873, %v1802
        %v1995 = vmul.f32 %v1878, %v1803
        %v1996 = vmul.f32 %v1883, %v1804
        %v1997 = vmul.f32 %v1888, %v1805
        %v1998 = vmul.f32 %v1893, %v1806
        %v1999 = vmul.f32 %v1898, %v1807
        %v2000 = vmul.f32 %v1903, %v1808
        %v2001 = vmul.f32 %v1908, %v1809
        %v2002 = vmul.f32 %v1913, %v1810
        %v2003 = vmul.f32 %v1918, %v1811
        %v2004 = vmul.f32 %v1923, %v1812
        %v2005 = vmul.f32 %v1928, %v1813
        %v2006 = vmul.f32 %v1933, %v1814
        %v2007 = vmul.f32 %v1938, %v1815
        %v2008 = vmul.f32 %v1943, %v1816
        %v2009 = vmul.f32 %v1948, %v1817
        %v2010 = vmul.f32 %v1953, %v1818
        %v2011 = vmul.f32 %v1958, %v1819
        %v2012 = vmul.f32 %v1963, %v1820
        %v2013 = vmul.f32 %v1968, %v1821
        %v2014 = vmul.f32 %v1973, %v1822
        %v2015 = vmul.f32 %v1978, %v1823
        %v2016 = vmul.f32 %v1983, %v1824
        %v2017 = vpack.c.bf16 %v1413, %v1409
        %v2018 = vpack.c.bf16 %v1415, %v1411
        %v2019 = vpack.c.bf16 %v1421, %v1417
        %v2020 = vpack.c.bf16 %v1423, %v1419
        %v2021 = vpack.c.bf16 %v1429, %v1425
        %v2022 = vpack.c.bf16 %v1431, %v1427
        %v2023 = vpack.c.bf16 %v1437, %v1433
        %v2024 = vpack.c.bf16 %v1439, %v1435
        %v2025 = vpack.c.bf16 %v1445, %v1441
        %v2026 = vpack.c.bf16 %v1447, %v1443
        %v2027 = vpack.c.bf16 %v1453, %v1449
        %v2028 = vpack.c.bf16 %v1455, %v1451
        %v2029 = vpack.c.bf16 %v1461, %v1457
        %v2030 = vpack.c.bf16 %v1463, %v1459
        %v2031 = vpack.c.bf16 %v1469, %v1465
        %v2032 = vpack.c.bf16 %v1471, %v1467
        %v2033 = vpack.c.bf16 %v1477, %v1473
        %v2034 = vpack.c.bf16 %v1479, %v1475
        %v2035 = vpack.c.bf16 %v1485, %v1481
        %v2036 = vpack.c.bf16 %v1487, %v1483
        %v2037 = vpack.c.bf16 %v1493, %v1489
        %v2038 = vpack.c.bf16 %v1495, %v1491
        %v2039 = vpack.c.bf16 %v1501, %v1497
        %v2040 = vpack.c.bf16 %v1503, %v1499
        %v2041 = vpack.c.bf16 %v1509, %v1505
        %v2042 = vpack.c.bf16 %v1511, %v1507
        %v2043 = vpack.c.bf16 %v1517, %v1513
        %v2044 = vpack.c.bf16 %v1519, %v1515
        %v2045 = vpack.c.bf16 %v1525, %v1521
        %v2046 = vpack.c.bf16 %v1527, %v1523
        %v2047 = vpack.c.bf16 %v1533, %v1529
        %v2048 = vpack.c.bf16 %v1535, %v1531
        %v2081 = vunpack.c.l.b16 %v607
        %v2082 = vunpack.c.l.b16 %v608
        %v2083 = vunpack.c.l.b16 %v609
        %v2084 = vunpack.c.l.b16 %v610
        %v2085 = vunpack.c.l.b16 %v611
        %v2086 = vunpack.c.l.b16 %v612
        %v2087 = vunpack.c.l.b16 %v613
        %v2088 = vunpack.c.l.b16 %v614
        %v2089 = vunpack.c.l.b16 %v615
        %v2090 = vunpack.c.l.b16 %v616
        %v2091 = vunpack.c.l.b16 %v617
        %v2092 = vunpack.c.l.b16 %v618
        %v2093 = vunpack.c.l.b16 %v619
        %v2094 = vunpack.c.l.b16 %v620
        %v2095 = vunpack.c.l.b16 %v621
        %v2096 = vunpack.c.l.b16 %v622
        %v2097 = vunpack.c.l.b16 %v623
        %v2098 = vunpack.c.l.b16 %v624
        %v2099 = vunpack.c.l.b16 %v625
        %v2100 = vunpack.c.l.b16 %v626
        %v2101 = vunpack.c.l.b16 %v627
        %v2102 = vunpack.c.l.b16 %v628
        %v2103 = vunpack.c.l.b16 %v629
        %v2104 = vunpack.c.l.b16 %v630
        %v2105 = vunpack.c.l.b16 %v631
        %v2106 = vunpack.c.l.b16 %v632
        %v2107 = vunpack.c.l.b16 %v633
        %v2108 = vunpack.c.l.b16 %v634
        %v2109 = vunpack.c.l.b16 %v635
        %v2110 = vunpack.c.l.b16 %v636
        %v2111 = vunpack.c.l.b16 %v637
        %v2112 = vunpack.c.l.b16 %v638
        %v2113 = vpack.c.b16 %v2082, %v2081
        %v2114 = vpack.c.b16 %v2084, %v2083
        %v2115 = vpack.c.b16 %v2086, %v2085
        %v2116 = vpack.c.b16 %v2088, %v2087
        %v2117 = vpack.c.b16 %v2090, %v2089
        %v2118 = vpack.c.b16 %v2092, %v2091
        %v2119 = vpack.c.b16 %v2094, %v2093
        %v2120 = vpack.c.b16 %v2096, %v2095
        %v2121 = vpack.c.b16 %v2098, %v2097
        %v2122 = vpack.c.b16 %v2100, %v2099
        %v2123 = vpack.c.b16 %v2102, %v2101
        %v2124 = vpack.c.b16 %v2104, %v2103
        %v2125 = vpack.c.b16 %v2106, %v2105
        %v2126 = vpack.c.b16 %v2108, %v2107
        %v2127 = vpack.c.b16 %v2110, %v2109
        %v2128 = vpack.c.b16 %v2112, %v2111
        %2145 = vmatprep.subr.bf16.mxu0 0
        %2146 = vmatpush1.bf16.msra.mxu0 %v2113
        %2147 = vmatprep.subr.bf16.mxu0 0
        %2148 = vmatpush1.bf16.msra.mxu0 %v2114
        %2149 = vmatprep.subr.bf16.mxu0 0
        %2150 = vmatpush1.bf16.msra.mxu0 %v2115
        %2151 = vmatprep.subr.bf16.mxu0 0
        %2152 = vmatpush1.bf16.msra.mxu0 %v2116
        %2153 = vmatprep.subr.bf16.mxu0 0
        %2154 = vmatpush1.bf16.msra.mxu0 %v2117
        %2155 = vmatprep.subr.bf16.mxu0 0
        %2156 = vmatpush1.bf16.msra.mxu0 %v2118
        %2157 = vmatprep.subr.bf16.mxu0 0
        %2158 = vmatpush1.bf16.msra.mxu0 %v2119
        %2159 = vmatprep.subr.bf16.mxu0 0
        %2160 = vmatpush1.bf16.msra.mxu0 %v2120
        %2161 = vmatprep.subr.bf16.mxu0 0
        %2162 = vmatpush1.bf16.msra.mxu0 %v2121
        %2163 = vmatprep.subr.bf16.mxu0 0
        %2164 = vmatpush1.bf16.msra.mxu0 %v2122
        %2165 = vmatprep.subr.bf16.mxu0 0
        %2166 = vmatpush1.bf16.msra.mxu0 %v2123
        %2167 = vmatprep.subr.bf16.mxu0 0
        %2168 = vmatpush1.bf16.msra.mxu0 %v2124
        %2169 = vmatprep.subr.bf16.mxu0 0
        %2170 = vmatpush1.bf16.msra.mxu0 %v2125
        %2171 = vmatprep.subr.bf16.mxu0 0
        %2172 = vmatpush1.bf16.msra.mxu0 %v2126
        %2173 = vmatprep.subr.bf16.mxu0 0
        %2174 = vmatpush1.bf16.msra.mxu0 %v2127
        %2175 = vmatprep.subr.bf16.mxu0 0
        %2176 = vmatpush1.bf16.msra.mxu0 %v2128
        %2177 = vmatprep.mubr.bf16.mxu0 %v2018
        %2178 = vmatmul.mubr.bf16.gmra.mrb[0].mxu0 %v2017
        %v2179 = vpop.f32.mrb[0].mxu0
        %v2180 = vadd.f32 0.0, %v2179
        %v2181 = vpop.f32.mrb[0].mxu0
        %v2182 = vpop.f32.mrb[0].mxu0
        %v2183 = vadd.f32 0.0, %v2182
        %v2184 = vpop.f32.mrb[0].mxu0
        %2185 = vmatprep.mubr.bf16.mxu0 %v2020
        %2186 = vmatmul.mubr.bf16.gmra.mrb[0].mxu0 %v2019
        %v2187 = vpop.f32.mrb[0].mxu0
        %v2188 = vadd.f32 0.0, %v2187
        %v2189 = vpop.f32.mrb[0].mxu0
        %v2190 = vpop.f32.mrb[0].mxu0
        %v2191 = vadd.f32 0.0, %v2190
        %v2192 = vpop.f32.mrb[0].mxu0
        %2193 = vmatprep.mubr.bf16.mxu0 %v2022
        %2194 = vmatmul.mubr.bf16.gmra.mrb[0].mxu0 %v2021
        %v2195 = vpop.f32.mrb[0].mxu0
        %v2196 = vadd.f32 0.0, %v2195
        %v2197 = vpop.f32.mrb[0].mxu0
        %v2198 = vpop.f32.mrb[0].mxu0
        %v2199 = vadd.f32 0.0, %v2198
        %v2200 = vpop.f32.mrb[0].mxu0
        %2201 = vmatprep.mubr.bf16.mxu0 %v2024
        %2202 = vmatmul.mubr.bf16.gmra.mrb[0].mxu0 %v2023
        %v2203 = vpop.f32.mrb[0].mxu0
        %v2204 = vadd.f32 0.0, %v2203
        %v2205 = vpop.f32.mrb[0].mxu0
        %v2206 = vpop.f32.mrb[0].mxu0
        %v2207 = vadd.f32 0.0, %v2206
        %v2208 = vpop.f32.mrb[0].mxu0
        %2209 = vmatprep.mubr.bf16.mxu0 %v2026
        %2210 = vmatmul.mubr.bf16.gmra.mrb[0].mxu0 %v2025
        %v2211 = vpop.f32.mrb[0].mxu0
        %v2212 = vadd.f32 0.0, %v2211
        %v2213 = vpop.f32.mrb[0].mxu0
        %v2214 = vpop.f32.mrb[0].mxu0
        %v2215 = vadd.f32 0.0, %v2214
        %v2216 = vpop.f32.mrb[0].mxu0
        %2217 = vmatprep.mubr.bf16.mxu0 %v2028
        %2218 = vmatmul.mubr.bf16.gmra.mrb[0].mxu0 %v2027
        %v2219 = vpop.f32.mrb[0].mxu0
        %v2220 = vadd.f32 0.0, %v2219
        %v2221 = vpop.f32.mrb[0].mxu0
        %v2222 = vpop.f32.mrb[0].mxu0
        %v2223 = vadd.f32 0.0, %v2222
        %v2224 = vpop.f32.mrb[0].mxu0
        %2225 = vmatprep.mubr.bf16.mxu0 %v2030
        %2226 = vmatmul.mubr.bf16.gmra.mrb[0].mxu0 %v2029
        %v2227 = vpop.f32.mrb[0].mxu0
        %v2228 = vadd.f32 0.0, %v2227
        %v2229 = vpop.f32.mrb[0].mxu0
        %v2230 = vpop.f32.mrb[0].mxu0
        %v2231 = vadd.f32 0.0, %v2230
        %v2232 = vpop.f32.mrb[0].mxu0
        %2233 = vmatprep.mubr.bf16.mxu0 %v2032
        %2234 = vmatmul.mubr.bf16.gmra.mrb[0].mxu0 %v2031
        %v2235 = vpop.f32.mrb[0].mxu0
        %v2236 = vadd.f32 0.0, %v2235
        %v2237 = vpop.f32.mrb[0].mxu0
        %v2238 = vpop.f32.mrb[0].mxu0
        %v2239 = vadd.f32 0.0, %v2238
        %v2240 = vpop.f32.mrb[0].mxu0
        %2241 = vmatprep.mubr.bf16.mxu0 %v2034
        %2242 = vmatmul.mubr.bf16.gmra.mrb[0].mxu0 %v2033
        %v2243 = vpop.f32.mrb[0].mxu0
        %v2244 = vadd.f32 0.0, %v2243
        %v2245 = vpop.f32.mrb[0].mxu0
        %v2246 = vpop.f32.mrb[0].mxu0
        %v2247 = vadd.f32 0.0, %v2246
        %v2248 = vpop.f32.mrb[0].mxu0
        %2249 = vmatprep.mubr.bf16.mxu0 %v2036
        %2250 = vmatmul.mubr.bf16.gmra.mrb[0].mxu0 %v2035
        %v2251 = vpop.f32.mrb[0].mxu0
        %v2252 = vadd.f32 0.0, %v2251
        %v2253 = vpop.f32.mrb[0].mxu0
        %v2254 = vpop.f32.mrb[0].mxu0
        %v2255 = vadd.f32 0.0, %v2254
        %v2256 = vpop.f32.mrb[0].mxu0
        %2257 = vmatprep.mubr.bf16.mxu0 %v2038
        %2258 = vmatmul.mubr.bf16.gmra.mrb[0].mxu0 %v2037
        %v2259 = vpop.f32.mrb[0].mxu0
        %v2260 = vadd.f32 0.0, %v2259
        %v2261 = vpop.f32.mrb[0].mxu0
        %v2262 = vpop.f32.mrb[0].mxu0
        %v2263 = vadd.f32 0.0, %v2262
        %v2264 = vpop.f32.mrb[0].mxu0
        %2265 = vmatprep.mubr.bf16.mxu0 %v2040
        %2266 = vmatmul.mubr.bf16.gmra.mrb[0].mxu0 %v2039
        %v2267 = vpop.f32.mrb[0].mxu0
        %v2268 = vadd.f32 0.0, %v2267
        %v2269 = vpop.f32.mrb[0].mxu0
        %v2270 = vpop.f32.mrb[0].mxu0
        %v2271 = vadd.f32 0.0, %v2270
        %v2272 = vpop.f32.mrb[0].mxu0
        %2273 = vmatprep.mubr.bf16.mxu0 %v2042
        %2274 = vmatmul.mubr.bf16.gmra.mrb[0].mxu0 %v2041
        %v2275 = vpop.f32.mrb[0].mxu0
        %v2276 = vadd.f32 0.0, %v2275
        %v2277 = vpop.f32.mrb[0].mxu0
        %v2278 = vpop.f32.mrb[0].mxu0
        %v2279 = vadd.f32 0.0, %v2278
        %v2280 = vpop.f32.mrb[0].mxu0
        %2281 = vmatprep.mubr.bf16.mxu0 %v2044
        %2282 = vmatmul.mubr.bf16.gmra.mrb[0].mxu0 %v2043
        %v2283 = vpop.f32.mrb[0].mxu0
        %v2284 = vadd.f32 0.0, %v2283
        %v2285 = vpop.f32.mrb[0].mxu0
        %v2286 = vpop.f32.mrb[0].mxu0
        %v2287 = vadd.f32 0.0, %v2286
        %v2288 = vpop.f32.mrb[0].mxu0
        %2289 = vmatprep.mubr.bf16.mxu0 %v2046
        %2290 = vmatmul.mubr.bf16.gmra.mrb[0].mxu0 %v2045
        %v2291 = vpop.f32.mrb[0].mxu0
        %v2292 = vadd.f32 0.0, %v2291
        %v2293 = vpop.f32.mrb[0].mxu0
        %v2294 = vpop.f32.mrb[0].mxu0
        %v2295 = vadd.f32 0.0, %v2294
        %v2296 = vpop.f32.mrb[0].mxu0
        %2297 = vmatprep.mubr.bf16.mxu0 %v2048
        %2298 = vmatmul.mubr.bf16.gmra.mrb[0].mxu0 %v2047
        %v2299 = vpop.f32.mrb[0].mxu0
        %v2300 = vadd.f32 0.0, %v2299
        %v2301 = vpop.f32.mrb[0].mxu0
        %v2302 = vpop.f32.mrb[0].mxu0
        %v2303 = vadd.f32 0.0, %v2302
        %v2304 = vpop.f32.mrb[0].mxu0
        %2305 = vdwg.mxu0
        %v2306 = vadd.f32 %v1985, %v2180
        %v2307 = vadd.f32 %v1986, %v2183
        %v2308 = vadd.f32 %v1987, %v2188
        %v2309 = vadd.f32 %v1988, %v2191
        %v2310 = vadd.f32 %v1989, %v2196
        %v2311 = vadd.f32 %v1990, %v2199
        %v2312 = vadd.f32 %v1991, %v2204
        %v2313 = vadd.f32 %v1992, %v2207
        %v2314 = vadd.f32 %v1993, %v2212
        %v2315 = vadd.f32 %v1994, %v2215
        %v2316 = vadd.f32 %v1995, %v2220
        %v2317 = vadd.f32 %v1996, %v2223
        %v2318 = vadd.f32 %v1997, %v2228
        %v2319 = vadd.f32 %v1998, %v2231
        %v2320 = vadd.f32 %v1999, %v2236
        %v2321 = vadd.f32 %v2000, %v2239
        %v2322 = vadd.f32 %v2001, %v2244
        %v2323 = vadd.f32 %v2002, %v2247
        %v2324 = vadd.f32 %v2003, %v2252
        %v2325 = vadd.f32 %v2004, %v2255
        %v2326 = vadd.f32 %v2005, %v2260
        %v2327 = vadd.f32 %v2006, %v2263
        %v2328 = vadd.f32 %v2007, %v2268
        %v2329 = vadd.f32 %v2008, %v2271
        %v2330 = vadd.f32 %v2009, %v2276
        %v2331 = vadd.f32 %v2010, %v2279
        %v2332 = vadd.f32 %v2011, %v2284
        %v2333 = vadd.f32 %v2012, %v2287
        %v2334 = vadd.f32 %v2013, %v2292
        %v2335 = vadd.f32 %v2014, %v2295
        %v2336 = vadd.f32 %v2015, %v2300
        %v2337 = vadd.f32 %v2016, %v2303
        %2338 = vst [vmem:[#allocation4] sm:$0xff] %v2306
        %2339 = vst [vmem:[#allocation4 + $0x8] sm:$0xff] %v2307
        %2340 = vst [vmem:[#allocation4 + $0x10] sm:$0xff] %v2308
        %2341 = vst [vmem:[#allocation4 + $0x18] sm:$0xff] %v2309
        %2342 = vst [vmem:[#allocation4 + $0x20] sm:$0xff] %v2310
        %2343 = vst [vmem:[#allocation4 + $0x28] sm:$0xff] %v2311
        %2344 = vst [vmem:[#allocation4 + $0x30] sm:$0xff] %v2312
        %2345 = vst [vmem:[#allocation4 + $0x38] sm:$0xff] %v2313
        %2346 = vst [vmem:[#allocation4 + $0x40] sm:$0xff] %v2314
        %2347 = vst [vmem:[#allocation4 + $0x48] sm:$0xff] %v2315
        %2348 = vst [vmem:[#allocation4 + $0x50] sm:$0xff] %v2316
        %2349 = vst [vmem:[#allocation4 + $0x58] sm:$0xff] %v2317
        %2350 = vst [vmem:[#allocation4 + $0x60] sm:$0xff] %v2318
        %2351 = vst [vmem:[#allocation4 + $0x68] sm:$0xff] %v2319
        %2352 = vst [vmem:[#allocation4 + $0x70] sm:$0xff] %v2320
        %2353 = vst [vmem:[#allocation4 + $0x78] sm:$0xff] %v2321
        %2354 = vst [vmem:[#allocation4 + $0x80] sm:$0xff] %v2322
        %2355 = vst [vmem:[#allocation4 + $0x88] sm:$0xff] %v2323
        %2356 = vst [vmem:[#allocation4 + $0x90] sm:$0xff] %v2324
        %2357 = vst [vmem:[#allocation4 + $0x98] sm:$0xff] %v2325
        %2358 = vst [vmem:[#allocation4 + $0xa0] sm:$0xff] %v2326
        %2359 = vst [vmem:[#allocation4 + $0xa8] sm:$0xff] %v2327
        %2360 = vst [vmem:[#allocation4 + $0xb0] sm:$0xff] %v2328
        %2361 = vst [vmem:[#allocation4 + $0xb8] sm:$0xff] %v2329
        %2362 = vst [vmem:[#allocation4 + $0xc0] sm:$0xff] %v2330
        %2363 = vst [vmem:[#allocation4 + $0xc8] sm:$0xff] %v2331
        %2364 = vst [vmem:[#allocation4 + $0xd0] sm:$0xff] %v2332
        %2365 = vst [vmem:[#allocation4 + $0xd8] sm:$0xff] %v2333
        %2366 = vst [vmem:[#allocation4 + $0xe0] sm:$0xff] %v2334
        %2367 = vst [vmem:[#allocation4 + $0xe8] sm:$0xff] %v2335
        %2368 = vst [vmem:[#allocation4 + $0xf0] sm:$0xff] %v2336
        %2369 = vst [vmem:[#allocation4 + $0xf8] sm:$0xff] %v2337
        %p2370 = scmp.eq.s32.totalorder %s34, 1
        // Predicated region
        $region57: #{tpu_custom_call.1} parent=39 // pred_check
          %p2371 = pneg %p2370
        $region58: #{tpu_custom_call.1} parent=39 // pred_check_branch
          %2373 = sbr.rel (%p2371) target = $region60
        $region59: #{tpu_custom_call.1} parent=39 // pred_region
          %v2374 = vld [vmem:[#allocation4] sm:$0xff]
          %v2375 = vld [vmem:[#allocation4 + $0x8] sm:$0xff]
          %v2376 = vld [vmem:[#allocation4 + $0x10] sm:$0xff]
          %v2377 = vld [vmem:[#allocation4 + $0x18] sm:$0xff]
          %v2378 = vld [vmem:[#allocation4 + $0x20] sm:$0xff]
          %v2379 = vld [vmem:[#allocation4 + $0x28] sm:$0xff]
          %v2380 = vld [vmem:[#allocation4 + $0x30] sm:$0xff]
          %v2381 = vld [vmem:[#allocation4 + $0x38] sm:$0xff]
          %v2382 = vld [vmem:[#allocation4 + $0x40] sm:$0xff]
          %v2383 = vld [vmem:[#allocation4 + $0x48] sm:$0xff]
          %v2384 = vld [vmem:[#allocation4 + $0x50] sm:$0xff]
          %v2385 = vld [vmem:[#allocation4 + $0x58] sm:$0xff]
          %v2386 = vld [vmem:[#allocation4 + $0x60] sm:$0xff]
          %v2387 = vld [vmem:[#allocation4 + $0x68] sm:$0xff]
          %v2388 = vld [vmem:[#allocation4 + $0x70] sm:$0xff]
          %v2389 = vld [vmem:[#allocation4 + $0x78] sm:$0xff]
          %v2390 = vld [vmem:[#allocation4 + $0x80] sm:$0xff]
          %v2391 = vld [vmem:[#allocation4 + $0x88] sm:$0xff]
          %v2392 = vld [vmem:[#allocation4 + $0x90] sm:$0xff]
          %v2393 = vld [vmem:[#allocation4 + $0x98] sm:$0xff]
          %v2394 = vld [vmem:[#allocation4 + $0xa0] sm:$0xff]
          %v2395 = vld [vmem:[#allocation4 + $0xa8] sm:$0xff]
          %v2396 = vld [vmem:[#allocation4 + $0xb0] sm:$0xff]
          %v2397 = vld [vmem:[#allocation4 + $0xb8] sm:$0xff]
          %v2398 = vld [vmem:[#allocation4 + $0xc0] sm:$0xff]
          %v2399 = vld [vmem:[#allocation4 + $0xc8] sm:$0xff]
          %v2400 = vld [vmem:[#allocation4 + $0xd0] sm:$0xff]
          %v2401 = vld [vmem:[#allocation4 + $0xd8] sm:$0xff]
          %v2402 = vld [vmem:[#allocation4 + $0xe0] sm:$0xff]
          %v2403 = vld [vmem:[#allocation4 + $0xe8] sm:$0xff]
          %v2404 = vld [vmem:[#allocation4 + $0xf0] sm:$0xff]
          %v2405 = vld [vmem:[#allocation4 + $0xf8] sm:$0xff]
          %v2406 = vld [vmem:[#allocation3] sm:$0xff]
          %v2407 = vld [vmem:[#allocation3 + $0x8] sm:$0xff]
          %v2408 = vld [vmem:[#allocation3 + $0x10] sm:$0xff]
          %v2409 = vld [vmem:[#allocation3 + $0x18] sm:$0xff]
          %v2410 = vld [vmem:[#allocation3 + $0x20] sm:$0xff]
          %v2411 = vld [vmem:[#allocation3 + $0x28] sm:$0xff]
          %v2412 = vld [vmem:[#allocation3 + $0x30] sm:$0xff]
          %v2413 = vld [vmem:[#allocation3 + $0x38] sm:$0xff]
          %v2414 = vld [vmem:[#allocation3 + $0x40] sm:$0xff]
          %v2415 = vld [vmem:[#allocation3 + $0x48] sm:$0xff]
          %v2416 = vld [vmem:[#allocation3 + $0x50] sm:$0xff]
          %v2417 = vld [vmem:[#allocation3 + $0x58] sm:$0xff]
          %v2418 = vld [vmem:[#allocation3 + $0x60] sm:$0xff]
          %v2419 = vld [vmem:[#allocation3 + $0x68] sm:$0xff]
          %v2420 = vld [vmem:[#allocation3 + $0x70] sm:$0xff]
          %v2421 = vld [vmem:[#allocation3 + $0x78] sm:$0xff]
          %v2422 = vld [vmem:[#allocation3 + $0x80] sm:$0xff]
          %v2423 = vld [vmem:[#allocation3 + $0x88] sm:$0xff]
          %v2424 = vld [vmem:[#allocation3 + $0x90] sm:$0xff]
          %v2425 = vld [vmem:[#allocation3 + $0x98] sm:$0xff]
          %v2426 = vld [vmem:[#allocation3 + $0xa0] sm:$0xff]
          %v2427 = vld [vmem:[#allocation3 + $0xa8] sm:$0xff]
          %v2428 = vld [vmem:[#allocation3 + $0xb0] sm:$0xff]
          %v2429 = vld [vmem:[#allocation3 + $0xb8] sm:$0xff]
          %v2430 = vld [vmem:[#allocation3 + $0xc0] sm:$0xff]
          %v2431 = vld [vmem:[#allocation3 + $0xc8] sm:$0xff]
          %v2432 = vld [vmem:[#allocation3 + $0xd0] sm:$0xff]
          %v2433 = vld [vmem:[#allocation3 + $0xd8] sm:$0xff]
          %v2434 = vld [vmem:[#allocation3 + $0xe0] sm:$0xff]
          %v2435 = vld [vmem:[#allocation3 + $0xe8] sm:$0xff]
          %v2436 = vld [vmem:[#allocation3 + $0xf0] sm:$0xff]
          %v2437 = vld [vmem:[#allocation3 + $0xf8] sm:$0xff]
          %v2438 = vrcp.pop %v2406
          %v2439 = vmul.f32 1.0, %v2438
          %v2440 = vrcp.pop %v2407
          %v2441 = vmul.f32 1.0, %v2440
          %v2442 = vrcp.pop %v2408
          %v2443 = vmul.f32 1.0, %v2442
          %v2444 = vrcp.pop %v2409
          %v2445 = vmul.f32 1.0, %v2444
          %v2446 = vrcp.pop %v2410
          %v2447 = vmul.f32 1.0, %v2446
          %v2448 = vrcp.pop %v2411
          %v2449 = vmul.f32 1.0, %v2448
          %v2450 = vrcp.pop %v2412
          %v2451 = vmul.f32 1.0, %v2450
          %v2452 = vrcp.pop %v2413
          %v2453 = vmul.f32 1.0, %v2452
          %v2454 = vrcp.pop %v2414
          %v2455 = vmul.f32 1.0, %v2454
          %v2456 = vrcp.pop %v2415
          %v2457 = vmul.f32 1.0, %v2456
          %v2458 = vrcp.pop %v2416
          %v2459 = vmul.f32 1.0, %v2458
          %v2460 = vrcp.pop %v2417
          %v2461 = vmul.f32 1.0, %v2460
          %v2462 = vrcp.pop %v2418
          %v2463 = vmul.f32 1.0, %v2462
          %v2464 = vrcp.pop %v2419
          %v2465 = vmul.f32 1.0, %v2464
          %v2466 = vrcp.pop %v2420
          %v2467 = vmul.f32 1.0, %v2466
          %v2468 = vrcp.pop %v2421
          %v2469 = vmul.f32 1.0, %v2468
          %v2470 = vrcp.pop %v2422
          %v2471 = vmul.f32 1.0, %v2470
          %v2472 = vrcp.pop %v2423
          %v2473 = vmul.f32 1.0, %v2472
          %v2474 = vrcp.pop %v2424
          %v2475 = vmul.f32 1.0, %v2474
          %v2476 = vrcp.pop %v2425
          %v2477 = vmul.f32 1.0, %v2476
          %v2478 = vrcp.pop %v2426
          %v2479 = vmul.f32 1.0, %v2478
          %v2480 = vrcp.pop %v2427
          %v2481 = vmul.f32 1.0, %v2480
          %v2482 = vrcp.pop %v2428
          %v2483 = vmul.f32 1.0, %v2482
          %v2484 = vrcp.pop %v2429
          %v2485 = vmul.f32 1.0, %v2484
          %v2486 = vrcp.pop %v2430
          %v2487 = vmul.f32 1.0, %v2486
          %v2488 = vrcp.pop %v2431
          %v2489 = vmul.f32 1.0, %v2488
          %v2490 = vrcp.pop %v2432
          %v2491 = vmul.f32 1.0, %v2490
          %v2492 = vrcp.pop %v2433
          %v2493 = vmul.f32 1.0, %v2492
          %v2494 = vrcp.pop %v2434
          %v2495 = vmul.f32 1.0, %v2494
          %v2496 = vrcp.pop %v2435
          %v2497 = vmul.f32 1.0, %v2496
          %v2498 = vrcp.pop %v2436
          %v2499 = vmul.f32 1.0, %v2498
          %v2500 = vrcp.pop %v2437
          %v2501 = vmul.f32 1.0, %v2500
          %2503 = vset.pattern.permute.xlu0 0
          %2504 = vperm.xlu0 %2503, %v2439
          %v2505 = vpop.permute.xlu0 %2504
          %2508 = vset.pattern.permute.xlu0 0
          %2509 = vperm.xlu0 %2508, %v2441
          %v2510 = vpop.permute.xlu0 %2509
          %2513 = vset.pattern.permute.xlu0 0
          %2514 = vperm.xlu0 %2513, %v2443
          %v2515 = vpop.permute.xlu0 %2514
          %2518 = vset.pattern.permute.xlu0 0
          %2519 = vperm.xlu0 %2518, %v2445
          %v2520 = vpop.permute.xlu0 %2519
          %2523 = vset.pattern.permute.xlu0 0
          %2524 = vperm.xlu0 %2523, %v2447
          %v2525 = vpop.permute.xlu0 %2524
          %2528 = vset.pattern.permute.xlu0 0
          %2529 = vperm.xlu0 %2528, %v2449
          %v2530 = vpop.permute.xlu0 %2529
          %2533 = vset.pattern.permute.xlu0 0
          %2534 = vperm.xlu0 %2533, %v2451
          %v2535 = vpop.permute.xlu0 %2534
          %2538 = vset.pattern.permute.xlu0 0
          %2539 = vperm.xlu0 %2538, %v2453
          %v2540 = vpop.permute.xlu0 %2539
          %2543 = vset.pattern.permute.xlu0 0
          %2544 = vperm.xlu0 %2543, %v2455
          %v2545 = vpop.permute.xlu0 %2544
          %2548 = vset.pattern.permute.xlu0 0
          %2549 = vperm.xlu0 %2548, %v2457
          %v2550 = vpop.permute.xlu0 %2549
          %2553 = vset.pattern.permute.xlu0 0
          %2554 = vperm.xlu0 %2553, %v2459
          %v2555 = vpop.permute.xlu0 %2554
          %2558 = vset.pattern.permute.xlu0 0
          %2559 = vperm.xlu0 %2558, %v2461
          %v2560 = vpop.permute.xlu0 %2559
          %2563 = vset.pattern.permute.xlu0 0
          %2564 = vperm.xlu0 %2563, %v2463
          %v2565 = vpop.permute.xlu0 %2564
          %2568 = vset.pattern.permute.xlu0 0
          %2569 = vperm.xlu0 %2568, %v2465
          %v2570 = vpop.permute.xlu0 %2569
          %2573 = vset.pattern.permute.xlu0 0
          %2574 = vperm.xlu0 %2573, %v2467
          %v2575 = vpop.permute.xlu0 %2574
          %2578 = vset.pattern.permute.xlu0 0
          %2579 = vperm.xlu0 %2578, %v2469
          %v2580 = vpop.permute.xlu0 %2579
          %2583 = vset.pattern.permute.xlu0 0
          %2584 = vperm.xlu0 %2583, %v2471
          %v2585 = vpop.permute.xlu0 %2584
          %2588 = vset.pattern.permute.xlu0 0
          %2589 = vperm.xlu0 %2588, %v2473
          %v2590 = vpop.permute.xlu0 %2589
          %2593 = vset.pattern.permute.xlu0 0
          %2594 = vperm.xlu0 %2593, %v2475
          %v2595 = vpop.permute.xlu0 %2594
          %2598 = vset.pattern.permute.xlu0 0
          %2599 = vperm.xlu0 %2598, %v2477
          %v2600 = vpop.permute.xlu0 %2599
          %2603 = vset.pattern.permute.xlu0 0
          %2604 = vperm.xlu0 %2603, %v2479
          %v2605 = vpop.permute.xlu0 %2604
          %2608 = vset.pattern.permute.xlu0 0
          %2609 = vperm.xlu0 %2608, %v2481
          %v2610 = vpop.permute.xlu0 %2609
          %2613 = vset.pattern.permute.xlu0 0
          %2614 = vperm.xlu0 %2613, %v2483
          %v2615 = vpop.permute.xlu0 %2614
          %2618 = vset.pattern.permute.xlu0 0
          %2619 = vperm.xlu0 %2618, %v2485
          %v2620 = vpop.permute.xlu0 %2619
          %2623 = vset.pattern.permute.xlu0 0
          %2624 = vperm.xlu0 %2623, %v2487
          %v2625 = vpop.permute.xlu0 %2624
          %2628 = vset.pattern.permute.xlu0 0
          %2629 = vperm.xlu0 %2628, %v2489
          %v2630 = vpop.permute.xlu0 %2629
          %2633 = vset.pattern.permute.xlu0 0
          %2634 = vperm.xlu0 %2633, %v2491
          %v2635 = vpop.permute.xlu0 %2634
          %2638 = vset.pattern.permute.xlu0 0
          %2639 = vperm.xlu0 %2638, %v2493
          %v2640 = vpop.permute.xlu0 %2639
          %2643 = vset.pattern.permute.xlu0 0
          %2644 = vperm.xlu0 %2643, %v2495
          %v2645 = vpop.permute.xlu0 %2644
          %2648 = vset.pattern.permute.xlu0 0
          %2649 = vperm.xlu0 %2648, %v2497
          %v2650 = vpop.permute.xlu0 %2649
          %2653 = vset.pattern.permute.xlu0 0
          %2654 = vperm.xlu0 %2653, %v2499
          %v2655 = vpop.permute.xlu0 %2654
          %2658 = vset.pattern.permute.xlu0 0
          %2659 = vperm.xlu0 %2658, %v2501
          %v2660 = vpop.permute.xlu0 %2659
          %v2662 = vmul.f32 %v2374, %v2505
          %v2663 = vmul.f32 %v2375, %v2510
          %v2664 = vmul.f32 %v2376, %v2515
          %v2665 = vmul.f32 %v2377, %v2520
          %v2666 = vmul.f32 %v2378, %v2525
          %v2667 = vmul.f32 %v2379, %v2530
          %v2668 = vmul.f32 %v2380, %v2535
          %v2669 = vmul.f32 %v2381, %v2540
          %v2670 = vmul.f32 %v2382, %v2545
          %v2671 = vmul.f32 %v2383, %v2550
          %v2672 = vmul.f32 %v2384, %v2555
          %v2673 = vmul.f32 %v2385, %v2560
          %v2674 = vmul.f32 %v2386, %v2565
          %v2675 = vmul.f32 %v2387, %v2570
          %v2676 = vmul.f32 %v2388, %v2575
          %v2677 = vmul.f32 %v2389, %v2580
          %v2678 = vmul.f32 %v2390, %v2585
          %v2679 = vmul.f32 %v2391, %v2590
          %v2680 = vmul.f32 %v2392, %v2595
          %v2681 = vmul.f32 %v2393, %v2600
          %v2682 = vmul.f32 %v2394, %v2605
          %v2683 = vmul.f32 %v2395, %v2610
          %v2684 = vmul.f32 %v2396, %v2615
          %v2685 = vmul.f32 %v2397, %v2620
          %v2686 = vmul.f32 %v2398, %v2625
          %v2687 = vmul.f32 %v2399, %v2630
          %v2688 = vmul.f32 %v2400, %v2635
          %v2689 = vmul.f32 %v2401, %v2640
          %v2690 = vmul.f32 %v2402, %v2645
          %v2691 = vmul.f32 %v2403, %v2650
          %v2692 = vmul.f32 %v2404, %v2655
          %v2693 = vmul.f32 %v2405, %v2660
          %v2694 = vpack.c.bf16 %v2663, %v2662
          %v2695 = vpack.c.bf16 %v2665, %v2664
          %v2696 = vpack.c.bf16 %v2667, %v2666
          %v2697 = vpack.c.bf16 %v2669, %v2668
          %v2698 = vpack.c.bf16 %v2671, %v2670
          %v2699 = vpack.c.bf16 %v2673, %v2672
          %v2700 = vpack.c.bf16 %v2675, %v2674
          %v2701 = vpack.c.bf16 %v2677, %v2676
          %v2702 = vpack.c.bf16 %v2679, %v2678
          %v2703 = vpack.c.bf16 %v2681, %v2680
          %v2704 = vpack.c.bf16 %v2683, %v2682
          %v2705 = vpack.c.bf16 %v2685, %v2684
          %v2706 = vpack.c.bf16 %v2687, %v2686
          %v2707 = vpack.c.bf16 %v2689, %v2688
          %v2708 = vpack.c.bf16 %v2691, %v2690
          %v2709 = vpack.c.bf16 %v2693, %v2692
          %v2726 = vunpack.c.l.b16 %v2694
          %v2727 = vunpack.c.h.b16 %v2694
          %v2728 = vunpack.c.l.b16 %v2695
          %v2729 = vunpack.c.h.b16 %v2695
          %v2730 = vunpack.c.l.b16 %v2696
          %v2731 = vunpack.c.h.b16 %v2696
          %v2732 = vunpack.c.l.b16 %v2697
          %v2733 = vunpack.c.h.b16 %v2697
          %v2734 = vunpack.c.l.b16 %v2698
          %v2735 = vunpack.c.h.b16 %v2698
          %v2736 = vunpack.c.l.b16 %v2699
          %v2737 = vunpack.c.h.b16 %v2699
          %v2738 = vunpack.c.l.b16 %v2700
          %v2739 = vunpack.c.h.b16 %v2700
          %v2740 = vunpack.c.l.b16 %v2701
          %v2741 = vunpack.c.h.b16 %v2701
          %v2742 = vunpack.c.l.b16 %v2702
          %v2743 = vunpack.c.h.b16 %v2702
          %v2744 = vunpack.c.l.b16 %v2703
          %v2745 = vunpack.c.h.b16 %v2703
          %v2746 = vunpack.c.l.b16 %v2704
          %v2747 = vunpack.c.h.b16 %v2704
          %v2748 = vunpack.c.l.b16 %v2705
          %v2749 = vunpack.c.h.b16 %v2705
          %v2750 = vunpack.c.l.b16 %v2706
          %v2751 = vunpack.c.h.b16 %v2706
          %v2752 = vunpack.c.l.b16 %v2707
          %v2753 = vunpack.c.h.b16 %v2707
          %v2754 = vunpack.c.l.b16 %v2708
          %v2755 = vunpack.c.h.b16 %v2708
          %v2756 = vunpack.c.l.b16 %v2709
          %v2757 = vunpack.c.h.b16 %v2709
          %v2758 = vpack.c.b16 %v2726, %v2726
          %v2759 = vpack.c.b16 %v2727, %v2727
          %v2760 = vpack.c.b16 %v2728, %v2728
          %v2761 = vpack.c.b16 %v2729, %v2729
          %v2762 = vpack.c.b16 %v2730, %v2730
          %v2763 = vpack.c.b16 %v2731, %v2731
          %v2764 = vpack.c.b16 %v2732, %v2732
          %v2765 = vpack.c.b16 %v2733, %v2733
          %v2766 = vpack.c.b16 %v2734, %v2734
          %v2767 = vpack.c.b16 %v2735, %v2735
          %v2768 = vpack.c.b16 %v2736, %v2736
          %v2769 = vpack.c.b16 %v2737, %v2737
          %v2770 = vpack.c.b16 %v2738, %v2738
          %v2771 = vpack.c.b16 %v2739, %v2739
          %v2772 = vpack.c.b16 %v2740, %v2740
          %v2773 = vpack.c.b16 %v2741, %v2741
          %v2774 = vpack.c.b16 %v2742, %v2742
          %v2775 = vpack.c.b16 %v2743, %v2743
          %v2776 = vpack.c.b16 %v2744, %v2744
          %v2777 = vpack.c.b16 %v2745, %v2745
          %v2778 = vpack.c.b16 %v2746, %v2746
          %v2779 = vpack.c.b16 %v2747, %v2747
          %v2780 = vpack.c.b16 %v2748, %v2748
          %v2781 = vpack.c.b16 %v2749, %v2749
          %v2782 = vpack.c.b16 %v2750, %v2750
          %v2783 = vpack.c.b16 %v2751, %v2751
          %v2784 = vpack.c.b16 %v2752, %v2752
          %v2785 = vpack.c.b16 %v2753, %v2753
          %v2786 = vpack.c.b16 %v2754, %v2754
          %v2787 = vpack.c.b16 %v2755, %v2755
          %v2788 = vpack.c.b16 %v2756, %v2756
          %v2789 = vpack.c.b16 %v2757, %v2757
          %2822 = vst [vmem:[%s354] sm:$0xf] %v2758
          %2823 = vst [vmem:[%s354 + $0x4] sm:$0xf] %v2759
          %2824 = vst [vmem:[%s354 + $0x8] sm:$0xf] %v2760
          %2825 = vst [vmem:[%s354 + $0xc] sm:$0xf] %v2761
          %2826 = vst [vmem:[%s354 + $0x10] sm:$0xf] %v2762
          %2827 = vst [vmem:[%s354 + $0x14] sm:$0xf] %v2763
          %2828 = vst [vmem:[%s354 + $0x18] sm:$0xf] %v2764
          %2829 = vst [vmem:[%s354 + $0x1c] sm:$0xf] %v2765
          %2830 = vst [vmem:[%s354 + $0x20] sm:$0xf] %v2766
          %2831 = vst [vmem:[%s354 + $0x24] sm:$0xf] %v2767
          %2832 = vst [vmem:[%s354 + $0x28] sm:$0xf] %v2768
          %2833 = vst [vmem:[%s354 + $0x2c] sm:$0xf] %v2769
          %2834 = vst [vmem:[%s354 + $0x30] sm:$0xf] %v2770
          %2835 = vst [vmem:[%s354 + $0x34] sm:$0xf] %v2771
          %2836 = vst [vmem:[%s354 + $0x38] sm:$0xf] %v2772
          %2837 = vst [vmem:[%s354 + $0x3c] sm:$0xf] %v2773
          %2838 = vst [vmem:[%s354 + $0x40] sm:$0xf] %v2774
          %2839 = vst [vmem:[%s354 + $0x44] sm:$0xf] %v2775
          %2840 = vst [vmem:[%s354 + $0x48] sm:$0xf] %v2776
          %2841 = vst [vmem:[%s354 + $0x4c] sm:$0xf] %v2777
          %2842 = vst [vmem:[%s354 + $0x50] sm:$0xf] %v2778
          %2843 = vst [vmem:[%s354 + $0x54] sm:$0xf] %v2779
          %2844 = vst [vmem:[%s354 + $0x58] sm:$0xf] %v2780
          %2845 = vst [vmem:[%s354 + $0x5c] sm:$0xf] %v2781
          %2846 = vst [vmem:[%s354 + $0x60] sm:$0xf] %v2782
          %2847 = vst [vmem:[%s354 + $0x64] sm:$0xf] %v2783
          %2848 = vst [vmem:[%s354 + $0x68] sm:$0xf] %v2784
          %2849 = vst [vmem:[%s354 + $0x6c] sm:$0xf] %v2785
          %2850 = vst [vmem:[%s354 + $0x70] sm:$0xf] %v2786
          %2851 = vst [vmem:[%s354 + $0x74] sm:$0xf] %v2787
          %2852 = vst [vmem:[%s354 + $0x78] sm:$0xf] %v2788
          %2853 = vst [vmem:[%s354 + $0x7c] sm:$0xf] %v2789
        $region60: #{tpu_custom_call.1} parent=39 // pred_fallthru
          _
        %s2854 = sand.u32 %s182, 1
        %s2855 = scalar_lea.sflag [#allocation9], %s2854
        %s2856 = sand.u32 %s182, 1
        %s2857 = smul.addr %s2856, 128
        %s2858 = scalar_lea.vmem [#allocation13], %s2857
        // Predicated region
        $region61: #{tpu_custom_call.1} parent=39 // pred_check
          %p2859 = pneg %p192
        $region62: #{tpu_custom_call.1} parent=39 // pred_check_branch
          %2861 = sbr.rel (%p2859) target = $region64
        $region63: #{tpu_custom_call.1} parent=39 // pred_region
          %s2862 = smul.u32 32, %s33
          %s2864 = ssub.s32 2048, 2048
          %2865 = vsyncadd %s2855, %s2864
          %s2866 = smul.addr %s32, 32
          %s2867 = sadd.s32 %s2862, %s2866
          %s2868 = smul.addr %s2867, 64
          %s2869 = scalar_lea.hbm %s5, %s2868
          %s2870 = sshll.u32 %s2858, 4
          %s2871 = int_to_ptr.vmem [resolvable:$true] %s2870
          %2876 = dma.vmem_to_hbm [thread:$0]  %s2871, 2048, %s2869, %s2855, 64, 64, 4
        $region64: #{tpu_custom_call.1} parent=39 // pred_fallthru
          _
      $region40: #{tpu_custom_call.1} parent=5 // pred_fallthru
        _
      %p2877 = scmp.le.s32.totalorder 2, %s22
      // Predicated region
      $region65: #{tpu_custom_call.1} parent=5 // pred_check
        %p2878 = pneg %p2877
      $region66: #{tpu_custom_call.1} parent=5 // pred_check_branch
        %2880 = sbr.rel (%p2878) target = $region68
      $region67: #{tpu_custom_call.1} parent=5 // pred_region
        %s2881 = ssub.s32 %s22, 2
        // Predicated region
        $region69: #{tpu_custom_call.1} parent=67 // pred_check
          %p2882 = pneg %p198
        $region70: #{tpu_custom_call.1} parent=67 // pred_check_branch
          %2884 = sbr.rel (%p2882) target = $region72
        $region71: #{tpu_custom_call.1} parent=67 // pred_region
          %s2885 = sand.u32 %s183, 1
          %s2886 = scalar_lea.sflag [#allocation9], %s2885
          %s2887 = sand.u32 %s183, 1
          %s2888 = smul.addr %s2887, 128
          %s2889 = scalar_lea.vmem [#allocation13], %s2888
          %2890 = dma.done %s2886, 2048
        $region72: #{tpu_custom_call.1} parent=67 // pred_fallthru
          _
      $region68: #{tpu_custom_call.1} parent=5 // pred_fallthru
        _
    $region6: #{tpu_custom_call.1} parent=1 // loop_footer
      %s26 = sadd.s32 1, %s22
    $region7: #{tpu_custom_call.1} parent=1 // loop_footer_branch
      %21 = sbr.rel target = $region3
    $region8: #{tpu_custom_call.1} parent=1 // loop_exit
      _
    %2891 = vsyncpa [#allocation8], 1
    %s2892 = scalar_lea.sflag [#allocation8], 1
    %2893 = vsyncpa %s2892, 1
    %2894 = vsyncpa [#allocation11], 1
    %s2895 = scalar_lea.sflag [#allocation11], 1
    %2896 = vsyncpa %s2895, 1
    %2897 = vsyncpa [#allocation9], 1
    %s2898 = scalar_lea.sflag [#allocation9], 1
    %2899 = vsyncpa %s2898, 1

</llo_original>
